<compile_context>
chip_gen: v6e
topology: v6e:2x2x1
jax: 0.10.0
libtpu: 0.0.40
codegen_flags: <defaults>
</compile_context>

<pallas_src>
import functools

import jax
import jax.numpy as jnp
from jax.experimental import pallas as pl
from jax.experimental.pallas import tpu as pltpu


# ----------------------------------------------------------------------------
# helpers
# ----------------------------------------------------------------------------
def _fit_tile(dim: int, target: int) -> int:
    """Largest of (target, dim) that evenly tiles `dim` (full dim as fallback)."""
    t = min(dim, target)
    return t if dim % t == 0 else dim


# ----------------------------------------------------------------------------
# Kernel 1: tiled linear  y = x @ W + b  (optional fused ReLU)
# ----------------------------------------------------------------------------
def _linear_kernel(x_ref, w_ref, b_ref, o_ref, acc_ref, *, activation):
    k = pl.program_id(2)

    @pl.when(k == 0)
    def _():
        acc_ref[...] = jnp.zeros(acc_ref.shape, acc_ref.dtype)

    acc_ref[...] += jnp.dot(
        x_ref[...], w_ref[...], preferred_element_type=jnp.float32
    )

    @pl.when(k == pl.num_programs(2) - 1)
    def _():
        out = acc_ref[...] + b_ref[...].astype(jnp.float32)
        if activation == "relu":
            out = jnp.maximum(out, 0.0)
        o_ref[...] = out.astype(o_ref.dtype)


def pallas_linear(x, w, b, *, activation=None, out_dtype=None,
                  tm=256, tn=256, tk=512):
    """x: (M, K), w: (K, N) already transposed/lane-dense, b: (N,)."""
    M, K = x.shape
    Kw, N = w.shape
    assert K == Kw
    out_dtype = out_dtype or x.dtype
    tm, tn, tk = _fit_tile(M, tm), _fit_tile(N, tn), _fit_tile(K, tk)
    b2 = b.reshape(1, N).astype(jnp.float32)

    kernel = functools.partial(_linear_kernel, activation=activation)
    return pl.pallas_call(
        kernel,
        out_shape=jax.ShapeDtypeStruct((M, N), out_dtype),
        grid_spec=pltpu.PrefetchScalarGridSpec(
            num_scalar_prefetch=0,
            grid=(M // tm, N // tn, K // tk),
            in_specs=[
                pl.BlockSpec((tm, tk), lambda i, j, k: (i, k)),
                pl.BlockSpec((tk, tn), lambda i, j, k: (k, j)),
                pl.BlockSpec((1, tn), lambda i, j, k: (0, j)),
            ],
            out_specs=pl.BlockSpec((tm, tn), lambda i, j, k: (i, j)),
            scratch_shapes=[pltpu.VMEM((tm, tn), jnp.float32)],
        ),
        compiler_params=pltpu.CompilerParams(
            dimension_semantics=("parallel", "parallel", "arbitrary")),
    )(x, w, b2)


# ----------------------------------------------------------------------------
# Kernel 2: flash attention (online softmax), per (batch*head) slice
# ----------------------------------------------------------------------------
def _flash_kernel(q_ref, k_ref, v_ref, o_ref, m_sc, l_sc, acc_sc):
    ki = pl.program_id(2)

    @pl.when(ki == 0)
    def _():
        m_sc[...] = jnp.full(m_sc.shape, -jnp.inf, m_sc.dtype)
        l_sc[...] = jnp.zeros(l_sc.shape, l_sc.dtype)
        acc_sc[...] = jnp.zeros(acc_sc.shape, acc_sc.dtype)

    # scores: scale 1/sqrt(head_dim) already folded into W_q in the wrapper
    s = jnp.einsum("bqd,bkd->bqk", q_ref[...], k_ref[...],
                   preferred_element_type=jnp.float32)

    m_prev = m_sc[...]
    m_new = jnp.maximum(m_prev, s.max(axis=-1, keepdims=True))
    alpha = jnp.exp(m_prev - m_new)
    p = jnp.exp(s - m_new)

    l_sc[...] = alpha * l_sc[...] + p.sum(axis=-1, keepdims=True)
    acc_sc[...] = alpha * acc_sc[...] + jnp.einsum(
        "bqk,bkd->bqd", p.astype(v_ref.dtype), v_ref[...],
        preferred_element_type=jnp.float32)
    m_sc[...] = m_new

    @pl.when(ki == pl.num_programs(2) - 1)
    def _():
        inv_l = pl.reciprocal(l_sc[...], approx=True)
        o_ref[...] = (acc_sc[...] * inv_l).astype(o_ref.dtype)


def pallas_flash_attention(q, k, v, *, tq=256, tkv=256):
    """q, k, v: (B*H, T, head_dim), bf16. Returns (B*H, T, head_dim)."""
    BH, T, hd = q.shape
    tq, tkv = _fit_tile(T, tq), _fit_tile(T, tkv)

    return pl.pallas_call(
        _flash_kernel,
        out_shape=jax.ShapeDtypeStruct((BH, T, hd), q.dtype),
        grid_spec=pltpu.PrefetchScalarGridSpec(
            num_scalar_prefetch=0,
            grid=(BH, T // tq, T // tkv),
            in_specs=[
                pl.BlockSpec((1, tq, hd), lambda b, qi, ki: (b, qi, 0)),
                pl.BlockSpec((1, tkv, hd), lambda b, qi, ki: (b, ki, 0)),
                pl.BlockSpec((1, tkv, hd), lambda b, qi, ki: (b, ki, 0)),
            ],
            out_specs=pl.BlockSpec((1, tq, hd), lambda b, qi, ki: (b, qi, 0)),
            scratch_shapes=[
                pltpu.VMEM((1, tq, 1), jnp.float32),   # running max m
                pltpu.VMEM((1, tq, 1), jnp.float32),   # running sum l
                pltpu.VMEM((1, tq, hd), jnp.float32),  # output accumulator
            ],
        ),
        compiler_params=pltpu.CompilerParams(
            dimension_semantics=("parallel", "parallel", "arbitrary")),
    )(q, k, v)


# ----------------------------------------------------------------------------
# Kernel 3: fused residual-add + LayerNorm (f32)
# ----------------------------------------------------------------------------
def _add_ln_kernel(x_ref, y_ref, g_ref, b_ref, o_ref, *, eps):
    s = x_ref[...] + y_ref[...]
    mean = jnp.mean(s, axis=-1, keepdims=True)
    c = s - mean
    var = jnp.mean(c * c, axis=-1, keepdims=True)
    inv = jax.lax.rsqrt(var + eps)
    o_ref[...] = ((c * inv) * g_ref[...] + b_ref[...]).astype(o_ref.dtype)


def pallas_add_layernorm(x, y, gamma, beta, *, eps=1e-5, tr=256):
    M, D = x.shape
    tr = _fit_tile(M, tr)
    g2 = gamma.reshape(1, D).astype(jnp.float32)
    b2 = beta.reshape(1, D).astype(jnp.float32)

    kernel = functools.partial(_add_ln_kernel, eps=eps)
    return pl.pallas_call(
        kernel,
        out_shape=jax.ShapeDtypeStruct((M, D), jnp.float32),
        grid_spec=pltpu.PrefetchScalarGridSpec(
            num_scalar_prefetch=0,
            grid=(M // tr,),
            in_specs=[
                pl.BlockSpec((tr, D), lambda i: (i, 0)),
                pl.BlockSpec((tr, D), lambda i: (i, 0)),
                pl.BlockSpec((1, D), lambda i: (0, 0)),
                pl.BlockSpec((1, D), lambda i: (0, 0)),
            ],
            out_specs=pl.BlockSpec((tr, D), lambda i: (i, 0)),
        ),
        compiler_params=pltpu.CompilerParams(
            dimension_semantics=("parallel",)),
    )(x.astype(jnp.float32), y.astype(jnp.float32), g2, b2)


# ----------------------------------------------------------------------------
# Full SelfAttentionLayer forward (temporal mode, dropout = 0)
# ----------------------------------------------------------------------------
def self_attention_layer_forward(x, params, *, num_heads):
    B, T, D = x.shape
    H = num_heads
    hd = D // H
    scale = 1.0 / (hd ** 0.5)

    # --- one-time wrapper-side weight prep: transpose to (D_in, D_out),
    #     pack QKV, fold the attention scale into W_q / b_q, cast to bf16 ---
    w_qkv = jnp.concatenate(
        [params["Wq"] * scale, params["Wk"], params["Wv"]], axis=0
    ).T.astype(jnp.bfloat16)                                   # (D, 3D)
    b_qkv = jnp.concatenate(
        [params["bq"] * scale, params["bk"], params["bv"]], axis=0
    ).astype(jnp.float32)                                      # (3D,)
    w_o = params["Wo"].T.astype(jnp.bfloat16)                  # (D, D)
    w_1 = params["W1"].T.astype(jnp.bfloat16)                  # (D, FF)
    w_2 = params["W2"].T.astype(jnp.bfloat16)                  # (FF, D)

    x2d = x.reshape(B * T, D).astype(jnp.float32)

    # 1) fused QKV projection (bf16 matmul, f32 accumulation)
    qkv = pallas_linear(x2d.astype(jnp.bfloat16), w_qkv, b_qkv,
                        out_dtype=jnp.bfloat16)                # (B*T, 3D)
    q, k, v = qkv[:, :D], qkv[:, D:2 * D], qkv[:, 2 * D:]

    # Head split matching torch.split(last dim) + cat(batch dim):
    # feature chunk h of batch b  <->  attention over (b, h).
    def to_heads(z):
        return (z.reshape(B, T, H, hd)
                 .transpose(0, 2, 1, 3)
                 .reshape(B * H, T, hd))

    # 2) flash attention (online softmax, kv reduction innermost)
    oh = pallas_flash_attention(to_heads(q), to_heads(k), to_heads(v))
    o = (oh.reshape(B, H, T, hd)
           .transpose(0, 2, 1, 3)
           .reshape(B * T, D))                                 # heads packed on D

    # 3) output projection
    attn_out = pallas_linear(o, w_o, params["bo"], out_dtype=jnp.float32)

    # 4) dropout1 (p=0 -> identity) + residual + LayerNorm1
    h1 = pallas_add_layernorm(x2d, attn_out, params["ln1_g"], params["ln1_b"])

    # 5) feed-forward: Linear -> ReLU (fused into matmul epilogue) -> Linear
    ff = pallas_linear(h1.astype(jnp.bfloat16), w_1, params["b1"],
                       activation="relu", out_dtype=jnp.bfloat16)
    ff = pallas_linear(ff, w_2, params["b2"], out_dtype=jnp.float32)

    # 6) dropout2 (p=0 -> identity) + residual + LayerNorm2
    out = pallas_add_layernorm(h1, ff, params["ln2_g"], params["ln2_b"])
    return out.reshape(B, T, D)


# ----------------------------------------------------------------------------
# Pure-JAX reference (mirrors the PyTorch module exactly, f32)
# ----------------------------------------------------------------------------
def reference_forward(x, params, *, num_heads, eps=1e-5):
    B, T, D = x.shape
    H = num_heads
    hd = D // H

    def lin(z, W, b):
        return z @ W.T + b

    def heads(z):
        return z.reshape(B, T, H, hd).transpose(0, 2, 1, 3)

    q = heads(lin(x, params["Wq"], params["bq"]))
    k = heads(lin(x, params["Wk"], params["bk"]))
    v = heads(lin(x, params["Wv"], params["bv"]))

    s = jnp.einsum("bhqd,bhkd->bhqk", q, k) / (hd ** 0.5)
    p = jax.nn.softmax(s, axis=-1)
    o = jnp.einsum("bhqk,bhkd->bhqd", p, v)
    o = o.transpose(0, 2, 1, 3).reshape(B, T, D)
    o = lin(o, params["Wo"], params["bo"])

    def layer_norm(z, g, b):
        mu = z.mean(-1, keepdims=True)
        var = ((z - mu) ** 2).mean(-1, keepdims=True)
        return (z - mu) * jax.lax.rsqrt(var + eps) * g + b

    h1 = layer_norm(x + o, params["ln1_g"], params["ln1_b"])
    ff = lin(jnp.maximum(lin(h1, params["W1"], params["b1"]), 0.0),
             params["W2"], params["b2"])
    return layer_norm(h1 + ff, params["ln2_g"], params["ln2_b"])


# ----------------------------------------------------------------------------
# demo / smoke test
# ----------------------------------------------------------------------------
if __name__ == "__main__":
    B, T, D, H, FF = 2, 8, 32, 4, 64

    key = jax.random.PRNGKey(0)
    ks = jax.random.split(key, 14)

    def init_w(k, shape, fan_in):
        return jax.random.normal(k, shape, jnp.float32) / jnp.sqrt(float(fan_in))

    params = {
        "Wq": init_w(ks[0], (D, D), D),   "bq": init_w(ks[1], (D,), D),
        "Wk": init_w(ks[2], (D, D), D),   "bk": init_w(ks[3], (D,), D),
        "Wv": init_w(ks[4], (D, D), D),   "bv": init_w(ks[5], (D,), D),
        "Wo": init_w(ks[6], (D, D), D),   "bo": init_w(ks[7], (D,), D),
        "W1": init_w(ks[8], (FF, D), D),  "b1": init_w(ks[9], (FF,), D),
        "W2": init_w(ks[10], (D, FF), FF), "b2": init_w(ks[11], (D,), FF),
        "ln1_g": jnp.ones((D,), jnp.float32), "ln1_b": jnp.zeros((D,), jnp.float32),
        "ln2_g": jnp.ones((D,), jnp.float32), "ln2_b": jnp.zeros((D,), jnp.float32),
    }
    x = jax.random.normal(ks[12], (B, T, D), jnp.float32)

    fwd = jax.jit(functools.partial(self_attention_layer_forward, num_heads=H))
    out = fwd(x, params)
    out = jax.block_until_ready(out)

    ref = reference_forward(x, params, num_heads=H)
    max_err = float(jnp.max(jnp.abs(out - ref)))
    assert max_err < 1e-1, f"mismatch vs reference: max abs err = {max_err}"

    print("KERNEL_OK")
</pallas_src>

<mosaic_0001>
module attributes {stable_mosaic.version = 11 : i64} {
  func.func @_linear_kernel(%arg0: i32, %arg1: i32, %arg2: i32, %arg3: memref<16x32xbf16, #tpu.memory_space<vmem>>, %arg4: memref<32x96xbf16, #tpu.memory_space<vmem>>, %arg5: memref<1x96xf32, #tpu.memory_space<vmem>>, %arg6: memref<16x96xbf16, #tpu.memory_space<vmem>>, %arg7: memref<16x96xf32, #tpu.memory_space<vmem>>) attributes {dimension_semantics = [#tpu.dimension_semantics<parallel>, #tpu.dimension_semantics<parallel>, #tpu.dimension_semantics<arbitrary>], iteration_bounds = array<i64: 1, 1, 1>, scalar_prefetch = 0 : i64, scratch_operands = 1 : i64, tpu.core_type = #tpu.core_type<tc>, window_params = [{transform_indices = @transform_0, window_bounds = array<i64: 16, 32>}, {transform_indices = @transform_1, window_bounds = array<i64: 32, 96>}, {transform_indices = @transform_2, window_bounds = array<i64: 1, 96>}, {transform_indices = @transform_3, window_bounds = array<i64: 16, 96>}]} {
    %c0_i32 = arith.constant 0 : i32
    %0 = arith.cmpi eq, %arg2, %c0_i32 : i32
    %1 = arith.extui %0 : i1 to i32
    %c0_i32_0 = arith.constant 0 : i32
    %2 = arith.cmpi ne, %1, %c0_i32_0 : i32
    scf.if %2 {
      %cst_10 = arith.constant 0.000000e+00 : f32
      %12 = vector.broadcast %cst_10 : f32 to vector<16x96xf32>
      %c0_11 = arith.constant 0 : index
      %c0_12 = arith.constant 0 : index
      %13 = vector.load %arg7[%c0_11, %c0_12] : memref<16x96xf32, #tpu.memory_space<vmem>>, vector<16x96xf32>
      tpu.vector_store %arg7[%c0_11, %c0_12], %12 {strides = array<i32>} : memref<16x96xf32, #tpu.memory_space<vmem>>, vector<16x96xf32>,
    } else {
    }
    %c0 = arith.constant 0 : index
    %c0_1 = arith.constant 0 : index
    %3 = vector.load %arg7[%c0, %c0_1] : memref<16x96xf32, #tpu.memory_space<vmem>>, vector<16x96xf32>
    %c0_2 = arith.constant 0 : index
    %c0_3 = arith.constant 0 : index
    %4 = vector.load %arg3[%c0_2, %c0_3] : memref<16x32xbf16, #tpu.memory_space<vmem>>, vector<16x32xbf16>
    %c0_4 = arith.constant 0 : index
    %c0_5 = arith.constant 0 : index
    %5 = vector.load %arg4[%c0_4, %c0_5] : memref<32x96xbf16, #tpu.memory_space<vmem>>, vector<32x96xbf16>
    %cst = arith.constant dense<0.000000e+00> : vector<16x96xf32>
    %6 = tpu.matmul %4, %5, %cst {dimension_numbers = #tpu.dot_dimension_numbers<[1], [0], [0], [1], [0, 0, 1, 1], [], []>} : vector<16x32xbf16>, vector<32x96xbf16>, vector<16x96xf32> -> vector<16x96xf32>
    %7 = arith.addf %3, %6 : vector<16x96xf32>
    %c0_6 = arith.constant 0 : index
    %c0_7 = arith.constant 0 : index
    %8 = vector.load %arg7[%c0_6, %c0_7] : memref<16x96xf32, #tpu.memory_space<vmem>>, vector<16x96xf32>
    tpu.vector_store %arg7[%c0_6, %c0_7], %7 {strides = array<i32>} : memref<16x96xf32, #tpu.memory_space<vmem>>, vector<16x96xf32>,
    %c0_i32_8 = arith.constant 0 : i32
    %9 = arith.cmpi eq, %arg2, %c0_i32_8 : i32
    %10 = arith.extui %9 : i1 to i32
    %c0_i32_9 = arith.constant 0 : i32
    %11 = arith.cmpi ne, %10, %c0_i32_9 : i32
    scf.if %11 {
      %c0_10 = arith.constant 0 : index
      %c0_11 = arith.constant 0 : index
      %12 = vector.load %arg7[%c0_10, %c0_11] : memref<16x96xf32, #tpu.memory_space<vmem>>, vector<16x96xf32>
      %c0_12 = arith.constant 0 : index
      %c0_13 = arith.constant 0 : index
      %13 = vector.load %arg5[%c0_12, %c0_13] : memref<1x96xf32, #tpu.memory_space<vmem>>, vector<1x96xf32>
      %14 = vector.broadcast %13 : vector<1x96xf32> to vector<16x96xf32>
      %15 = arith.addf %12, %14 : vector<16x96xf32>
      %16 = arith.truncf %15 : vector<16x96xf32> to vector<16x96xbf16>
      %c0_14 = arith.constant 0 : index
      %c0_15 = arith.constant 0 : index
      %17 = vector.load %arg6[%c0_14, %c0_15] : memref<16x96xbf16, #tpu.memory_space<vmem>>, vector<16x96xbf16>
      tpu.vector_store %arg6[%c0_14, %c0_15], %16 {strides = array<i32>} : memref<16x96xbf16, #tpu.memory_space<vmem>>, vector<16x96xbf16>,
    } else {
    }
    return
  }
  func.func @transform_0(%arg0: i32, %arg1: i32, %arg2: i32) -> (i32, i32) {
    %c0_i32 = arith.constant 0 : i32
    return %arg0, %arg2 : i32, i32
  }
  func.func @transform_1(%arg0: i32, %arg1: i32, %arg2: i32) -> (i32, i32) {
    %c0_i32 = arith.constant 0 : i32
    return %arg2, %arg1 : i32, i32
  }
  func.func @transform_2(%arg0: i32, %arg1: i32, %arg2: i32) -> (i32, i32) {
    %c0_i32 = arith.constant 0 : i32
    %c0_i32_0 = arith.constant 0 : i32
    return %c0_i32, %arg1 : i32, i32
  }
  func.func @transform_3(%arg0: i32, %arg1: i32, %arg2: i32) -> (i32, i32) {
    %c0_i32 = arith.constant 0 : i32
    return %arg0, %arg1 : i32, i32
  }
}

module attributes {stable_mosaic.version = 11 : i64} {
  func.func @_flash_kernel(%arg0: i32, %arg1: i32, %arg2: i32, %arg3: memref<1x8x8xbf16, #tpu.memory_space<vmem>>, %arg4: memref<1x8x8xbf16, #tpu.memory_space<vmem>>, %arg5: memref<1x8x8xbf16, #tpu.memory_space<vmem>>, %arg6: memref<1x8x8xbf16, #tpu.memory_space<vmem>>, %arg7: memref<1x8x1xf32, #tpu.memory_space<vmem>>, %arg8: memref<1x8x1xf32, #tpu.memory_space<vmem>>, %arg9: memref<1x8x8xf32, #tpu.memory_space<vmem>>) attributes {dimension_semantics = [#tpu.dimension_semantics<parallel>, #tpu.dimension_semantics<parallel>, #tpu.dimension_semantics<arbitrary>], iteration_bounds = array<i64: 8, 1, 1>, scalar_prefetch = 0 : i64, scratch_operands = 3 : i64, tpu.core_type = #tpu.core_type<tc>, window_params = [{transform_indices = @transform_0, window_bounds = array<i64: 1, 8, 8>}, {transform_indices = @transform_1, window_bounds = array<i64: 1, 8, 8>}, {transform_indices = @transform_2, window_bounds = array<i64: 1, 8, 8>}, {transform_indices = @transform_3, window_bounds = array<i64: 1, 8, 8>}]} {
    %c0_i32 = arith.constant 0 : i32
    %0 = arith.cmpi eq, %arg2, %c0_i32 : i32
    %1 = arith.extui %0 : i1 to i32
    %c0_i32_0 = arith.constant 0 : i32
    %2 = arith.cmpi ne, %1, %c0_i32_0 : i32
    scf.if %2 {
      %cst_32 = arith.constant 0xFF800000 : f32
      %33 = vector.broadcast %cst_32 : f32 to vector<1x8x1xf32>
      %c0_33 = arith.constant 0 : index
      %c0_34 = arith.constant 0 : index
      %c0_35 = arith.constant 0 : index
      %34 = vector.load %arg7[%c0_33, %c0_34, %c0_35] : memref<1x8x1xf32, #tpu.memory_space<vmem>>, vector<1x8x1xf32>
      tpu.vector_store %arg7[%c0_33, %c0_34, %c0_35], %33 {strides = array<i32>} : memref<1x8x1xf32, #tpu.memory_space<vmem>>, vector<1x8x1xf32>,
      %cst_36 = arith.constant 0.000000e+00 : f32
      %35 = vector.broadcast %cst_36 : f32 to vector<1x8x1xf32>
      %c0_37 = arith.constant 0 : index
      %c0_38 = arith.constant 0 : index
      %c0_39 = arith.constant 0 : index
      %36 = vector.load %arg8[%c0_37, %c0_38, %c0_39] : memref<1x8x1xf32, #tpu.memory_space<vmem>>, vector<1x8x1xf32>
      tpu.vector_store %arg8[%c0_37, %c0_38, %c0_39], %35 {strides = array<i32>} : memref<1x8x1xf32, #tpu.memory_space<vmem>>, vector<1x8x1xf32>,
      %cst_40 = arith.constant 0.000000e+00 : f32
      %37 = vector.broadcast %cst_40 : f32 to vector<1x8x8xf32>
      %c0_41 = arith.constant 0 : index
      %c0_42 = arith.constant 0 : index
      %c0_43 = arith.constant 0 : index
      %38 = vector.load %arg9[%c0_41, %c0_42, %c0_43] : memref<1x8x8xf32, #tpu.memory_space<vmem>>, vector<1x8x8xf32>
      tpu.vector_store %arg9[%c0_41, %c0_42, %c0_43], %37 {strides = array<i32>} : memref<1x8x8xf32, #tpu.memory_space<vmem>>, vector<1x8x8xf32>,
    } else {
    }
    %c0 = arith.constant 0 : index
    %c0_1 = arith.constant 0 : index
    %c0_2 = arith.constant 0 : index
    %3 = vector.load %arg3[%c0, %c0_1, %c0_2] : memref<1x8x8xbf16, #tpu.memory_space<vmem>>, vector<1x8x8xbf16>
    %c0_3 = arith.constant 0 : index
    %c0_4 = arith.constant 0 : index
    %c0_5 = arith.constant 0 : index
    %4 = vector.load %arg4[%c0_3, %c0_4, %c0_5] : memref<1x8x8xbf16, #tpu.memory_space<vmem>>, vector<1x8x8xbf16>
    "tpu.trace_start"() <{level = 10 : i32, message = "bqd,bkd->bqk"}> : () -> ()
    %cst = arith.constant dense<0.000000e+00> : vector<1x8x8xf32>
    %5 = tpu.matmul %3, %4, %cst {dimension_numbers = #tpu.dot_dimension_numbers<[2], [2], [1], [1], [0, 0, 0, 1, 1, 1], [0], [0]>} : vector<1x8x8xbf16>, vector<1x8x8xbf16>, vector<1x8x8xf32> -> vector<1x8x8xf32>
    "tpu.trace_stop"() : () -> ()
    %c0_6 = arith.constant 0 : index
    %c0_7 = arith.constant 0 : index
    %c0_8 = arith.constant 0 : index
    %6 = vector.load %arg7[%c0_6, %c0_7, %c0_8] : memref<1x8x1xf32, #tpu.memory_space<vmem>>, vector<1x8x1xf32>
    %cst_9 = arith.constant dense<0xFF800000> : vector<1x8xf32>
    %7 = vector.multi_reduction <maximumf>, %5, %cst_9 [2] : vector<1x8x8xf32> to vector<1x8xf32>
    %8 = vector.shape_cast %7 : vector<1x8xf32> to vector<1x8x1xf32>
    %9 = arith.maximumf %6, %8 : vector<1x8x1xf32>
    %10 = arith.subf %6, %9 : vector<1x8x1xf32>
    %11 = math.exp %10 : vector<1x8x1xf32>
    %12 = vector.broadcast %9 : vector<1x8x1xf32> to vector<1x8x8xf32>
    %13 = arith.subf %5, %12 : vector<1x8x8xf32>
    %14 = math.exp %13 : vector<1x8x8xf32>
    %c0_10 = arith.constant 0 : index
    %c0_11 = arith.constant 0 : index
    %c0_12 = arith.constant 0 : index
    %15 = vector.load %arg8[%c0_10, %c0_11, %c0_12] : memref<1x8x1xf32, #tpu.memory_space<vmem>>, vector<1x8x1xf32>
    %16 = arith.mulf %11, %15 : vector<1x8x1xf32>
    %cst_13 = arith.constant dense<0.000000e+00> : vector<1x8xf32>
    %17 = vector.multi_reduction <add>, %14, %cst_13 [2] : vector<1x8x8xf32> to vector<1x8xf32>
    %18 = vector.shape_cast %17 : vector<1x8xf32> to vector<1x8x1xf32>
    %19 = arith.addf %16, %18 : vector<1x8x1xf32>
    %c0_14 = arith.constant 0 : index
    %c0_15 = arith.constant 0 : index
    %c0_16 = arith.constant 0 : index
    %20 = vector.load %arg8[%c0_14, %c0_15, %c0_16] : memref<1x8x1xf32, #tpu.memory_space<vmem>>, vector<1x8x1xf32>
    tpu.vector_store %arg8[%c0_14, %c0_15, %c0_16], %19 {strides = array<i32>} : memref<1x8x1xf32, #tpu.memory_space<vmem>>, vector<1x8x1xf32>,
    %c0_17 = arith.constant 0 : index
    %c0_18 = arith.constant 0 : index
    %c0_19 = arith.constant 0 : index
    %21 = vector.load %arg9[%c0_17, %c0_18, %c0_19] : memref<1x8x8xf32, #tpu.memory_space<vmem>>, vector<1x8x8xf32>
    %22 = vector.broadcast %11 : vector<1x8x1xf32> to vector<1x8x8xf32>
    %23 = arith.mulf %22, %21 : vector<1x8x8xf32>
    %24 = arith.truncf %14 : vector<1x8x8xf32> to vector<1x8x8xbf16>
    %c0_20 = arith.constant 0 : index
    %c0_21 = arith.constant 0 : index
    %c0_22 = arith.constant 0 : index
    %25 = vector.load %arg5[%c0_20, %c0_21, %c0_22] : memref<1x8x8xbf16, #tpu.memory_space<vmem>>, vector<1x8x8xbf16>
    "tpu.trace_start"() <{level = 10 : i32, message = "bqk,bkd->bqd"}> : () -> ()
    %cst_23 = arith.constant dense<0.000000e+00> : vector<1x8x8xf32>
    %26 = tpu.matmul %24, %25, %cst_23 {dimension_numbers = #tpu.dot_dimension_numbers<[2], [1], [1], [2], [0, 0, 0, 1, 1, 2], [0], [0]>} : vector<1x8x8xbf16>, vector<1x8x8xbf16>, vector<1x8x8xf32> -> vector<1x8x8xf32>
    "tpu.trace_stop"() : () -> ()
    %27 = arith.addf %23, %26 : vector<1x8x8xf32>
    %c0_24 = arith.constant 0 : index
    %c0_25 = arith.constant 0 : index
    %c0_26 = arith.constant 0 : index
    %28 = vector.load %arg9[%c0_24, %c0_25, %c0_26] : memref<1x8x8xf32, #tpu.memory_space<vmem>>, vector<1x8x8xf32>
    tpu.vector_store %arg9[%c0_24, %c0_25, %c0_26], %27 {strides = array<i32>} : memref<1x8x8xf32, #tpu.memory_space<vmem>>, vector<1x8x8xf32>,
    %c0_27 = arith.constant 0 : index
    %c0_28 = arith.constant 0 : index
    %c0_29 = arith.constant 0 : index
    %29 = vector.load %arg7[%c0_27, %c0_28, %c0_29] : memref<1x8x1xf32, #tpu.memory_space<vmem>>, vector<1x8x1xf32>
    tpu.vector_store %arg7[%c0_27, %c0_28, %c0_29], %9 {strides = array<i32>} : memref<1x8x1xf32, #tpu.memory_space<vmem>>, vector<1x8x1xf32>,
    %c0_i32_30 = arith.constant 0 : i32
    %30 = arith.cmpi eq, %arg2, %c0_i32_30 : i32
    %31 = arith.extui %30 : i1 to i32
    %c0_i32_31 = arith.constant 0 : i32
    %32 = arith.cmpi ne, %31, %c0_i32_31 : i32
    scf.if %32 {
      %c0_32 = arith.constant 0 : index
      %c0_33 = arith.constant 0 : index
      %c0_34 = arith.constant 0 : index
      %33 = vector.load %arg8[%c0_32, %c0_33, %c0_34] : memref<1x8x1xf32, #tpu.memory_space<vmem>>, vector<1x8x1xf32>
      %34 = tpu.reciprocal %33 {approx = true} : vector<1x8x1xf32> -> vector<1x8x1xf32>
      %c0_35 = arith.constant 0 : index
      %c0_36 = arith.constant 0 : index
      %c0_37 = arith.constant 0 : index
      %35 = vector.load %arg9[%c0_35, %c0_36, %c0_37] : memref<1x8x8xf32, #tpu.memory_space<vmem>>, vector<1x8x8xf32>
      %36 = vector.broadcast %34 : vector<1x8x1xf32> to vector<1x8x8xf32>
      %37 = arith.mulf %35, %36 : vector<1x8x8xf32>
      %38 = arith.truncf %37 : vector<1x8x8xf32> to vector<1x8x8xbf16>
      %c0_38 = arith.constant 0 : index
      %c0_39 = arith.constant 0 : index
      %c0_40 = arith.constant 0 : index
      %39 = vector.load %arg6[%c0_38, %c0_39, %c0_40] : memref<1x8x8xbf16, #tpu.memory_space<vmem>>, vector<1x8x8xbf16>
      tpu.vector_store %arg6[%c0_38, %c0_39, %c0_40], %38 {strides = array<i32>} : memref<1x8x8xbf16, #tpu.memory_space<vmem>>, vector<1x8x8xbf16>,
    } else {
    }
    return
  }
  func.func @transform_0(%arg0: i32, %arg1: i32, %arg2: i32) -> (i32, i32, i32) {
    %c0_i32 = arith.constant 0 : i32
    %c0_i32_0 = arith.constant 0 : i32
    return %arg0, %arg1, %c0_i32 : i32, i32, i32
  }
  func.func @transform_1(%arg0: i32, %arg1: i32, %arg2: i32) -> (i32, i32, i32) {
    %c0_i32 = arith.constant 0 : i32
    %c0_i32_0 = arith.constant 0 : i32
    return %arg0, %arg2, %c0_i32 : i32, i32, i32
  }
  func.func @transform_2(%arg0: i32, %arg1: i32, %arg2: i32) -> (i32, i32, i32) {
    %c0_i32 = arith.constant 0 : i32
    %c0_i32_0 = arith.constant 0 : i32
    return %arg0, %arg2, %c0_i32 : i32, i32, i32
  }
  func.func @transform_3(%arg0: i32, %arg1: i32, %arg2: i32) -> (i32, i32, i32) {
    %c0_i32 = arith.constant 0 : i32
    %c0_i32_0 = arith.constant 0 : i32
    return %arg0, %arg1, %c0_i32 : i32, i32, i32
  }
}

module attributes {stable_mosaic.version = 11 : i64} {
  func.func @_linear_kernel(%arg0: i32, %arg1: i32, %arg2: i32, %arg3: memref<16x32xbf16, #tpu.memory_space<vmem>>, %arg4: memref<32x32xbf16, #tpu.memory_space<vmem>>, %arg5: memref<1x32xf32, #tpu.memory_space<vmem>>, %arg6: memref<16x32xf32, #tpu.memory_space<vmem>>, %arg7: memref<16x32xf32, #tpu.memory_space<vmem>>) attributes {dimension_semantics = [#tpu.dimension_semantics<parallel>, #tpu.dimension_semantics<parallel>, #tpu.dimension_semantics<arbitrary>], iteration_bounds = array<i64: 1, 1, 1>, scalar_prefetch = 0 : i64, scratch_operands = 1 : i64, tpu.core_type = #tpu.core_type<tc>, window_params = [{transform_indices = @transform_0, window_bounds = array<i64: 16, 32>}, {transform_indices = @transform_1, window_bounds = array<i64: 32, 32>}, {transform_indices = @transform_2, window_bounds = array<i64: 1, 32>}, {transform_indices = @transform_3, window_bounds = array<i64: 16, 32>}]} {
    %c0_i32 = arith.constant 0 : i32
    %0 = arith.cmpi eq, %arg2, %c0_i32 : i32
    %1 = arith.extui %0 : i1 to i32
    %c0_i32_0 = arith.constant 0 : i32
    %2 = arith.cmpi ne, %1, %c0_i32_0 : i32
    scf.if %2 {
      %cst_10 = arith.constant 0.000000e+00 : f32
      %12 = vector.broadcast %cst_10 : f32 to vector<16x32xf32>
      %c0_11 = arith.constant 0 : index
      %c0_12 = arith.constant 0 : index
      %13 = vector.load %arg7[%c0_11, %c0_12] : memref<16x32xf32, #tpu.memory_space<vmem>>, vector<16x32xf32>
      tpu.vector_store %arg7[%c0_11, %c0_12], %12 {strides = array<i32>} : memref<16x32xf32, #tpu.memory_space<vmem>>, vector<16x32xf32>,
    } else {
    }
    %c0 = arith.constant 0 : index
    %c0_1 = arith.constant 0 : index
    %3 = vector.load %arg7[%c0, %c0_1] : memref<16x32xf32, #tpu.memory_space<vmem>>, vector<16x32xf32>
    %c0_2 = arith.constant 0 : index
    %c0_3 = arith.constant 0 : index
    %4 = vector.load %arg3[%c0_2, %c0_3] : memref<16x32xbf16, #tpu.memory_space<vmem>>, vector<16x32xbf16>
    %c0_4 = arith.constant 0 : index
    %c0_5 = arith.constant 0 : index
    %5 = vector.load %arg4[%c0_4, %c0_5] : memref<32x32xbf16, #tpu.memory_space<vmem>>, vector<32x32xbf16>
    %cst = arith.constant dense<0.000000e+00> : vector<16x32xf32>
    %6 = tpu.matmul %4, %5, %cst {dimension_numbers = #tpu.dot_dimension_numbers<[1], [0], [0], [1], [0, 0, 1, 1], [], []>} : vector<16x32xbf16>, vector<32x32xbf16>, vector<16x32xf32> -> vector<16x32xf32>
    %7 = arith.addf %3, %6 : vector<16x32xf32>
    %c0_6 = arith.constant 0 : index
    %c0_7 = arith.constant 0 : index
    %8 = vector.load %arg7[%c0_6, %c0_7] : memref<16x32xf32, #tpu.memory_space<vmem>>, vector<16x32xf32>
    tpu.vector_store %arg7[%c0_6, %c0_7], %7 {strides = array<i32>} : memref<16x32xf32, #tpu.memory_space<vmem>>, vector<16x32xf32>,
    %c0_i32_8 = arith.constant 0 : i32
    %9 = arith.cmpi eq, %arg2, %c0_i32_8 : i32
    %10 = arith.extui %9 : i1 to i32
    %c0_i32_9 = arith.constant 0 : i32
    %11 = arith.cmpi ne, %10, %c0_i32_9 : i32
    scf.if %11 {
      %c0_10 = arith.constant 0 : index
      %c0_11 = arith.constant 0 : index
      %12 = vector.load %arg7[%c0_10, %c0_11] : memref<16x32xf32, #tpu.memory_space<vmem>>, vector<16x32xf32>
      %c0_12 = arith.constant 0 : index
      %c0_13 = arith.constant 0 : index
      %13 = vector.load %arg5[%c0_12, %c0_13] : memref<1x32xf32, #tpu.memory_space<vmem>>, vector<1x32xf32>
      %14 = vector.broadcast %13 : vector<1x32xf32> to vector<16x32xf32>
      %15 = arith.addf %12, %14 : vector<16x32xf32>
      %c0_14 = arith.constant 0 : index
      %c0_15 = arith.constant 0 : index
      %16 = vector.load %arg6[%c0_14, %c0_15] : memref<16x32xf32, #tpu.memory_space<vmem>>, vector<16x32xf32>
      tpu.vector_store %arg6[%c0_14, %c0_15], %15 {strides = array<i32>} : memref<16x32xf32, #tpu.memory_space<vmem>>, vector<16x32xf32>,
    } else {
    }
    return
  }
  func.func @transform_0(%arg0: i32, %arg1: i32, %arg2: i32) -> (i32, i32) {
    %c0_i32 = arith.constant 0 : i32
    return %arg0, %arg2 : i32, i32
  }
  func.func @transform_1(%arg0: i32, %arg1: i32, %arg2: i32) -> (i32, i32) {
    %c0_i32 = arith.constant 0 : i32
    return %arg2, %arg1 : i32, i32
  }
  func.func @transform_2(%arg0: i32, %arg1: i32, %arg2: i32) -> (i32, i32) {
    %c0_i32 = arith.constant 0 : i32
    %c0_i32_0 = arith.constant 0 : i32
    return %c0_i32, %arg1 : i32, i32
  }
  func.func @transform_3(%arg0: i32, %arg1: i32, %arg2: i32) -> (i32, i32) {
    %c0_i32 = arith.constant 0 : i32
    return %arg0, %arg1 : i32, i32
  }
}

module attributes {stable_mosaic.version = 11 : i64} {
  func.func @_add_ln_kernel(%arg0: i32, %arg1: memref<16x32xf32, #tpu.memory_space<vmem>>, %arg2: memref<16x32xf32, #tpu.memory_space<vmem>>, %arg3: memref<1x32xf32, #tpu.memory_space<vmem>>, %arg4: memref<1x32xf32, #tpu.memory_space<vmem>>, %arg5: memref<16x32xf32, #tpu.memory_space<vmem>>) attributes {dimension_semantics = [#tpu.dimension_semantics<parallel>], iteration_bounds = array<i64: 1>, scalar_prefetch = 0 : i64, scratch_operands = 0 : i64, tpu.core_type = #tpu.core_type<tc>, window_params = [{transform_indices = @transform_0, window_bounds = array<i64: 16, 32>}, {transform_indices = @transform_1, window_bounds = array<i64: 16, 32>}, {pipeline_mode = #tpu.pipeline_mode<synchronous>, transform_indices = @transform_2, window_bounds = array<i64: 1, 32>}, {pipeline_mode = #tpu.pipeline_mode<synchronous>, transform_indices = @transform_3, window_bounds = array<i64: 1, 32>}, {transform_indices = @transform_4, window_bounds = array<i64: 16, 32>}]} {
    %c0 = arith.constant 0 : index
    %c0_0 = arith.constant 0 : index
    %0 = vector.load %arg1[%c0, %c0_0] : memref<16x32xf32, #tpu.memory_space<vmem>>, vector<16x32xf32>
    %c0_1 = arith.constant 0 : index
    %c0_2 = arith.constant 0 : index
    %1 = vector.load %arg2[%c0_1, %c0_2] : memref<16x32xf32, #tpu.memory_space<vmem>>, vector<16x32xf32>
    %2 = arith.addf %0, %1 : vector<16x32xf32>
    %cst = arith.constant dense<0.000000e+00> : vector<16xf32>
    %3 = vector.multi_reduction <add>, %2, %cst [1] : vector<16x32xf32> to vector<16xf32>
    %4 = vector.shape_cast %3 : vector<16xf32> to vector<16x1xf32>
    %cst_3 = arith.constant 3.200000e+01 : f32
    %5 = vector.broadcast %cst_3 : f32 to vector<16x1xf32>
    %6 = arith.divf %4, %5 : vector<16x1xf32>
    %7 = vector.broadcast %6 : vector<16x1xf32> to vector<16x32xf32>
    %8 = arith.subf %2, %7 : vector<16x32xf32>
    %9 = arith.mulf %8, %8 : vector<16x32xf32>
    %cst_4 = arith.constant dense<0.000000e+00> : vector<16xf32>
    %10 = vector.multi_reduction <add>, %9, %cst_4 [1] : vector<16x32xf32> to vector<16xf32>
    %11 = vector.shape_cast %10 : vector<16xf32> to vector<16x1xf32>
    %cst_5 = arith.constant 3.200000e+01 : f32
    %12 = vector.broadcast %cst_5 : f32 to vector<16x1xf32>
    %13 = arith.divf %11, %12 : vector<16x1xf32>
    %cst_6 = arith.constant 9.99999974E-6 : f32
    %14 = vector.broadcast %cst_6 : f32 to vector<16x1xf32>
    %15 = arith.addf %13, %14 : vector<16x1xf32>
    %16 = math.rsqrt %15 : vector<16x1xf32>
    %17 = vector.broadcast %16 : vector<16x1xf32> to vector<16x32xf32>
    %18 = arith.mulf %8, %17 : vector<16x32xf32>
    %c0_7 = arith.constant 0 : index
    %c0_8 = arith.constant 0 : index
    %19 = vector.load %arg3[%c0_7, %c0_8] : memref<1x32xf32, #tpu.memory_space<vmem>>, vector<1x32xf32>
    %20 = vector.broadcast %19 : vector<1x32xf32> to vector<16x32xf32>
    %21 = arith.mulf %18, %20 : vector<16x32xf32>
    %c0_9 = arith.constant 0 : index
    %c0_10 = arith.constant 0 : index
    %22 = vector.load %arg4[%c0_9, %c0_10] : memref<1x32xf32, #tpu.memory_space<vmem>>, vector<1x32xf32>
    %23 = vector.broadcast %22 : vector<1x32xf32> to vector<16x32xf32>
    %24 = arith.addf %21, %23 : vector<16x32xf32>
    %c0_11 = arith.constant 0 : index
    %c0_12 = arith.constant 0 : index
    %25 = vector.load %arg5[%c0_11, %c0_12] : memref<16x32xf32, #tpu.memory_space<vmem>>, vector<16x32xf32>
    tpu.vector_store %arg5[%c0_11, %c0_12], %24 {strides = array<i32>} : memref<16x32xf32, #tpu.memory_space<vmem>>, vector<16x32xf32>,
    return
  }
  func.func @transform_0(%arg0: i32) -> (i32, i32) {
    %c0_i32 = arith.constant 0 : i32
    %c0_i32_0 = arith.constant 0 : i32
    return %arg0, %c0_i32 : i32, i32
  }
  func.func @transform_1(%arg0: i32) -> (i32, i32) {
    %c0_i32 = arith.constant 0 : i32
    %c0_i32_0 = arith.constant 0 : i32
    return %arg0, %c0_i32 : i32, i32
  }
  func.func @transform_2(%arg0: i32) -> (i32, i32) {
    %c0_i32 = arith.constant 0 : i32
    %c0_i32_0 = arith.constant 0 : i32
    %c0_i32_1 = arith.constant 0 : i32
    return %c0_i32, %c0_i32_0 : i32, i32
  }
  func.func @transform_3(%arg0: i32) -> (i32, i32) {
    %c0_i32 = arith.constant 0 : i32
    %c0_i32_0 = arith.constant 0 : i32
    %c0_i32_1 = arith.constant 0 : i32
    return %c0_i32, %c0_i32_0 : i32, i32
  }
  func.func @transform_4(%arg0: i32) -> (i32, i32) {
    %c0_i32 = arith.constant 0 : i32
    %c0_i32_0 = arith.constant 0 : i32
    return %arg0, %c0_i32 : i32, i32
  }
}

module attributes {stable_mosaic.version = 11 : i64} {
  func.func @_linear_kernel(%arg0: i32, %arg1: i32, %arg2: i32, %arg3: memref<16x32xbf16, #tpu.memory_space<vmem>>, %arg4: memref<32x64xbf16, #tpu.memory_space<vmem>>, %arg5: memref<1x64xf32, #tpu.memory_space<vmem>>, %arg6: memref<16x64xbf16, #tpu.memory_space<vmem>>, %arg7: memref<16x64xf32, #tpu.memory_space<vmem>>) attributes {dimension_semantics = [#tpu.dimension_semantics<parallel>, #tpu.dimension_semantics<parallel>, #tpu.dimension_semantics<arbitrary>], iteration_bounds = array<i64: 1, 1, 1>, scalar_prefetch = 0 : i64, scratch_operands = 1 : i64, tpu.core_type = #tpu.core_type<tc>, window_params = [{transform_indices = @transform_0, window_bounds = array<i64: 16, 32>}, {transform_indices = @transform_1, window_bounds = array<i64: 32, 64>}, {transform_indices = @transform_2, window_bounds = array<i64: 1, 64>}, {transform_indices = @transform_3, window_bounds = array<i64: 16, 64>}]} {
    %c0_i32 = arith.constant 0 : i32
    %0 = arith.cmpi eq, %arg2, %c0_i32 : i32
    %1 = arith.extui %0 : i1 to i32
    %c0_i32_0 = arith.constant 0 : i32
    %2 = arith.cmpi ne, %1, %c0_i32_0 : i32
    scf.if %2 {
      %cst_10 = arith.constant 0.000000e+00 : f32
      %12 = vector.broadcast %cst_10 : f32 to vector<16x64xf32>
      %c0_11 = arith.constant 0 : index
      %c0_12 = arith.constant 0 : index
      %13 = vector.load %arg7[%c0_11, %c0_12] : memref<16x64xf32, #tpu.memory_space<vmem>>, vector<16x64xf32>
      tpu.vector_store %arg7[%c0_11, %c0_12], %12 {strides = array<i32>} : memref<16x64xf32, #tpu.memory_space<vmem>>, vector<16x64xf32>,
    } else {
    }
    %c0 = arith.constant 0 : index
    %c0_1 = arith.constant 0 : index
    %3 = vector.load %arg7[%c0, %c0_1] : memref<16x64xf32, #tpu.memory_space<vmem>>, vector<16x64xf32>
    %c0_2 = arith.constant 0 : index
    %c0_3 = arith.constant 0 : index
    %4 = vector.load %arg3[%c0_2, %c0_3] : memref<16x32xbf16, #tpu.memory_space<vmem>>, vector<16x32xbf16>
    %c0_4 = arith.constant 0 : index
    %c0_5 = arith.constant 0 : index
    %5 = vector.load %arg4[%c0_4, %c0_5] : memref<32x64xbf16, #tpu.memory_space<vmem>>, vector<32x64xbf16>
    %cst = arith.constant dense<0.000000e+00> : vector<16x64xf32>
    %6 = tpu.matmul %4, %5, %cst {dimension_numbers = #tpu.dot_dimension_numbers<[1], [0], [0], [1], [0, 0, 1, 1], [], []>} : vector<16x32xbf16>, vector<32x64xbf16>, vector<16x64xf32> -> vector<16x64xf32>
    %7 = arith.addf %3, %6 : vector<16x64xf32>
    %c0_6 = arith.constant 0 : index
    %c0_7 = arith.constant 0 : index
    %8 = vector.load %arg7[%c0_6, %c0_7] : memref<16x64xf32, #tpu.memory_space<vmem>>, vector<16x64xf32>
    tpu.vector_store %arg7[%c0_6, %c0_7], %7 {strides = array<i32>} : memref<16x64xf32, #tpu.memory_space<vmem>>, vector<16x64xf32>,
    %c0_i32_8 = arith.constant 0 : i32
    %9 = arith.cmpi eq, %arg2, %c0_i32_8 : i32
    %10 = arith.extui %9 : i1 to i32
    %c0_i32_9 = arith.constant 0 : i32
    %11 = arith.cmpi ne, %10, %c0_i32_9 : i32
    scf.if %11 {
      %c0_10 = arith.constant 0 : index
      %c0_11 = arith.constant 0 : index
      %12 = vector.load %arg7[%c0_10, %c0_11] : memref<16x64xf32, #tpu.memory_space<vmem>>, vector<16x64xf32>
      %c0_12 = arith.constant 0 : index
      %c0_13 = arith.constant 0 : index
      %13 = vector.load %arg5[%c0_12, %c0_13] : memref<1x64xf32, #tpu.memory_space<vmem>>, vector<1x64xf32>
      %14 = vector.broadcast %13 : vector<1x64xf32> to vector<16x64xf32>
      %15 = arith.addf %12, %14 : vector<16x64xf32>
      %cst_14 = arith.constant 0.000000e+00 : f32
      %16 = vector.broadcast %cst_14 : f32 to vector<16x64xf32>
      %17 = arith.maximumf %15, %16 : vector<16x64xf32>
      %18 = arith.truncf %17 : vector<16x64xf32> to vector<16x64xbf16>
      %c0_15 = arith.constant 0 : index
      %c0_16 = arith.constant 0 : index
      %19 = vector.load %arg6[%c0_15, %c0_16] : memref<16x64xbf16, #tpu.memory_space<vmem>>, vector<16x64xbf16>
      tpu.vector_store %arg6[%c0_15, %c0_16], %18 {strides = array<i32>} : memref<16x64xbf16, #tpu.memory_space<vmem>>, vector<16x64xbf16>,
    } else {
    }
    return
  }
  func.func @transform_0(%arg0: i32, %arg1: i32, %arg2: i32) -> (i32, i32) {
    %c0_i32 = arith.constant 0 : i32
    return %arg0, %arg2 : i32, i32
  }
  func.func @transform_1(%arg0: i32, %arg1: i32, %arg2: i32) -> (i32, i32) {
    %c0_i32 = arith.constant 0 : i32
    return %arg2, %arg1 : i32, i32
  }
  func.func @transform_2(%arg0: i32, %arg1: i32, %arg2: i32) -> (i32, i32) {
    %c0_i32 = arith.constant 0 : i32
    %c0_i32_0 = arith.constant 0 : i32
    return %c0_i32, %arg1 : i32, i32
  }
  func.func @transform_3(%arg0: i32, %arg1: i32, %arg2: i32) -> (i32, i32) {
    %c0_i32 = arith.constant 0 : i32
    return %arg0, %arg1 : i32, i32
  }
}

module attributes {stable_mosaic.version = 11 : i64} {
  func.func @_add_ln_kernel(%arg0: i32, %arg1: memref<16x32xf32, #tpu.memory_space<vmem>>, %arg2: memref<16x32xf32, #tpu.memory_space<vmem>>, %arg3: memref<1x32xf32, #tpu.memory_space<vmem>>, %arg4: memref<1x32xf32, #tpu.memory_space<vmem>>, %arg5: memref<16x32xf32, #tpu.memory_space<vmem>>) attributes {dimension_semantics = [#tpu.dimension_semantics<parallel>], iteration_bounds = array<i64: 1>, scalar_prefetch = 0 : i64, scratch_operands = 0 : i64, tpu.core_type = #tpu.core_type<tc>, window_params = [{transform_indices = @transform_0, window_bounds = array<i64: 16, 32>}, {transform_indices = @transform_1, window_bounds = array<i64: 16, 32>}, {pipeline_mode = #tpu.pipeline_mode<synchronous>, transform_indices = @transform_2, window_bounds = array<i64: 1, 32>}, {pipeline_mode = #tpu.pipeline_mode<synchronous>, transform_indices = @transform_3, window_bounds = array<i64: 1, 32>}, {transform_indices = @transform_4, window_bounds = array<i64: 16, 32>}]} {
    %c0 = arith.constant 0 : index
    %c0_0 = arith.constant 0 : index
    %0 = vector.load %arg1[%c0, %c0_0] : memref<16x32xf32, #tpu.memory_space<vmem>>, vector<16x32xf32>
    %c0_1 = arith.constant 0 : index
    %c0_2 = arith.constant 0 : index
    %1 = vector.load %arg2[%c0_1, %c0_2] : memref<16x32xf32, #tpu.memory_space<vmem>>, vector<16x32xf32>
    %2 = arith.addf %0, %1 : vector<16x32xf32>
    %cst = arith.constant dense<0.000000e+00> : vector<16xf32>
    %3 = vector.multi_reduction <add>, %2, %cst [1] : vector<16x32xf32> to vector<16xf32>
    %4 = vector.shape_cast %3 : vector<16xf32> to vector<16x1xf32>
    %cst_3 = arith.constant 3.200000e+01 : f32
    %5 = vector.broadcast %cst_3 : f32 to vector<16x1xf32>
    %6 = arith.divf %4, %5 : vector<16x1xf32>
    %7 = vector.broadcast %6 : vector<16x1xf32> to vector<16x32xf32>
    %8 = arith.subf %2, %7 : vector<16x32xf32>
    %9 = arith.mulf %8, %8 : vector<16x32xf32>
    %cst_4 = arith.constant dense<0.000000e+00> : vector<16xf32>
    %10 = vector.multi_reduction <add>, %9, %cst_4 [1] : vector<16x32xf32> to vector<16xf32>
    %11 = vector.shape_cast %10 : vector<16xf32> to vector<16x1xf32>
    %cst_5 = arith.constant 3.200000e+01 : f32
    %12 = vector.broadcast %cst_5 : f32 to vector<16x1xf32>
    %13 = arith.divf %11, %12 : vector<16x1xf32>
    %cst_6 = arith.constant 9.99999974E-6 : f32
    %14 = vector.broadcast %cst_6 : f32 to vector<16x1xf32>
    %15 = arith.addf %13, %14 : vector<16x1xf32>
    %16 = math.rsqrt %15 : vector<16x1xf32>
    %17 = vector.broadcast %16 : vector<16x1xf32> to vector<16x32xf32>
    %18 = arith.mulf %8, %17 : vector<16x32xf32>
    %c0_7 = arith.constant 0 : index
    %c0_8 = arith.constant 0 : index
    %19 = vector.load %arg3[%c0_7, %c0_8] : memref<1x32xf32, #tpu.memory_space<vmem>>, vector<1x32xf32>
    %20 = vector.broadcast %19 : vector<1x32xf32> to vector<16x32xf32>
    %21 = arith.mulf %18, %20 : vector<16x32xf32>
    %c0_9 = arith.constant 0 : index
    %c0_10 = arith.constant 0 : index
    %22 = vector.load %arg4[%c0_9, %c0_10] : memref<1x32xf32, #tpu.memory_space<vmem>>, vector<1x32xf32>
    %23 = vector.broadcast %22 : vector<1x32xf32> to vector<16x32xf32>
    %24 = arith.addf %21, %23 : vector<16x32xf32>
    %c0_11 = arith.constant 0 : index
    %c0_12 = arith.constant 0 : index
    %25 = vector.load %arg5[%c0_11, %c0_12] : memref<16x32xf32, #tpu.memory_space<vmem>>, vector<16x32xf32>
    tpu.vector_store %arg5[%c0_11, %c0_12], %24 {strides = array<i32>} : memref<16x32xf32, #tpu.memory_space<vmem>>, vector<16x32xf32>,
    return
  }
  func.func @transform_0(%arg0: i32) -> (i32, i32) {
    %c0_i32 = arith.constant 0 : i32
    %c0_i32_0 = arith.constant 0 : i32
    return %arg0, %c0_i32 : i32, i32
  }
  func.func @transform_1(%arg0: i32) -> (i32, i32) {
    %c0_i32 = arith.constant 0 : i32
    %c0_i32_0 = arith.constant 0 : i32
    return %arg0, %c0_i32 : i32, i32
  }
  func.func @transform_2(%arg0: i32) -> (i32, i32) {
    %c0_i32 = arith.constant 0 : i32
    %c0_i32_0 = arith.constant 0 : i32
    %c0_i32_1 = arith.constant 0 : i32
    return %c0_i32, %c0_i32_0 : i32, i32
  }
  func.func @transform_3(%arg0: i32) -> (i32, i32) {
    %c0_i32 = arith.constant 0 : i32
    %c0_i32_0 = arith.constant 0 : i32
    %c0_i32_1 = arith.constant 0 : i32
    return %c0_i32, %c0_i32_0 : i32, i32
  }
  func.func @transform_4(%arg0: i32) -> (i32, i32) {
    %c0_i32 = arith.constant 0 : i32
    %c0_i32_0 = arith.constant 0 : i32
    return %arg0, %c0_i32 : i32, i32
  }
}

module attributes {stable_mosaic.version = 11 : i64} {
  func.func @_linear_kernel(%arg0: i32, %arg1: i32, %arg2: i32, %arg3: memref<16x64xbf16, #tpu.memory_space<vmem>>, %arg4: memref<64x32xbf16, #tpu.memory_space<vmem>>, %arg5: memref<1x32xf32, #tpu.memory_space<vmem>>, %arg6: memref<16x32xf32, #tpu.memory_space<vmem>>, %arg7: memref<16x32xf32, #tpu.memory_space<vmem>>) attributes {dimension_semantics = [#tpu.dimension_semantics<parallel>, #tpu.dimension_semantics<parallel>, #tpu.dimension_semantics<arbitrary>], iteration_bounds = array<i64: 1, 1, 1>, scalar_prefetch = 0 : i64, scratch_operands = 1 : i64, tpu.core_type = #tpu.core_type<tc>, window_params = [{transform_indices = @transform_0, window_bounds = array<i64: 16, 64>}, {transform_indices = @transform_1, window_bounds = array<i64: 64, 32>}, {transform_indices = @transform_2, window_bounds = array<i64: 1, 32>}, {transform_indices = @transform_3, window_bounds = array<i64: 16, 32>}]} {
    %c0_i32 = arith.constant 0 : i32
    %0 = arith.cmpi eq, %arg2, %c0_i32 : i32
    %1 = arith.extui %0 : i1 to i32
    %c0_i32_0 = arith.constant 0 : i32
    %2 = arith.cmpi ne, %1, %c0_i32_0 : i32
    scf.if %2 {
      %cst_10 = arith.constant 0.000000e+00 : f32
      %12 = vector.broadcast %cst_10 : f32 to vector<16x32xf32>
      %c0_11 = arith.constant 0 : index
      %c0_12 = arith.constant 0 : index
      %13 = vector.load %arg7[%c0_11, %c0_12] : memref<16x32xf32, #tpu.memory_space<vmem>>, vector<16x32xf32>
      tpu.vector_store %arg7[%c0_11, %c0_12], %12 {strides = array<i32>} : memref<16x32xf32, #tpu.memory_space<vmem>>, vector<16x32xf32>,
    } else {
    }
    %c0 = arith.constant 0 : index
    %c0_1 = arith.constant 0 : index
    %3 = vector.load %arg7[%c0, %c0_1] : memref<16x32xf32, #tpu.memory_space<vmem>>, vector<16x32xf32>
    %c0_2 = arith.constant 0 : index
    %c0_3 = arith.constant 0 : index
    %4 = vector.load %arg3[%c0_2, %c0_3] : memref<16x64xbf16, #tpu.memory_space<vmem>>, vector<16x64xbf16>
    %c0_4 = arith.constant 0 : index
    %c0_5 = arith.constant 0 : index
    %5 = vector.load %arg4[%c0_4, %c0_5] : memref<64x32xbf16, #tpu.memory_space<vmem>>, vector<64x32xbf16>
    %cst = arith.constant dense<0.000000e+00> : vector<16x32xf32>
    %6 = tpu.matmul %4, %5, %cst {dimension_numbers = #tpu.dot_dimension_numbers<[1], [0], [0], [1], [0, 0, 1, 1], [], []>} : vector<16x64xbf16>, vector<64x32xbf16>, vector<16x32xf32> -> vector<16x32xf32>
    %7 = arith.addf %3, %6 : vector<16x32xf32>
    %c0_6 = arith.constant 0 : index
    %c0_7 = arith.constant 0 : index
    %8 = vector.load %arg7[%c0_6, %c0_7] : memref<16x32xf32, #tpu.memory_space<vmem>>, vector<16x32xf32>
    tpu.vector_store %arg7[%c0_6, %c0_7], %7 {strides = array<i32>} : memref<16x32xf32, #tpu.memory_space<vmem>>, vector<16x32xf32>,
    %c0_i32_8 = arith.constant 0 : i32
    %9 = arith.cmpi eq, %arg2, %c0_i32_8 : i32
    %10 = arith.extui %9 : i1 to i32
    %c0_i32_9 = arith.constant 0 : i32
    %11 = arith.cmpi ne, %10, %c0_i32_9 : i32
    scf.if %11 {
      %c0_10 = arith.constant 0 : index
      %c0_11 = arith.constant 0 : index
      %12 = vector.load %arg7[%c0_10, %c0_11] : memref<16x32xf32, #tpu.memory_space<vmem>>, vector<16x32xf32>
      %c0_12 = arith.constant 0 : index
      %c0_13 = arith.constant 0 : index
      %13 = vector.load %arg5[%c0_12, %c0_13] : memref<1x32xf32, #tpu.memory_space<vmem>>, vector<1x32xf32>
      %14 = vector.broadcast %13 : vector<1x32xf32> to vector<16x32xf32>
      %15 = arith.addf %12, %14 : vector<16x32xf32>
      %c0_14 = arith.constant 0 : index
      %c0_15 = arith.constant 0 : index
      %16 = vector.load %arg6[%c0_14, %c0_15] : memref<16x32xf32, #tpu.memory_space<vmem>>, vector<16x32xf32>
      tpu.vector_store %arg6[%c0_14, %c0_15], %15 {strides = array<i32>} : memref<16x32xf32, #tpu.memory_space<vmem>>, vector<16x32xf32>,
    } else {
    }
    return
  }
  func.func @transform_0(%arg0: i32, %arg1: i32, %arg2: i32) -> (i32, i32) {
    %c0_i32 = arith.constant 0 : i32
    return %arg0, %arg2 : i32, i32
  }
  func.func @transform_1(%arg0: i32, %arg1: i32, %arg2: i32) -> (i32, i32) {
    %c0_i32 = arith.constant 0 : i32
    return %arg2, %arg1 : i32, i32
  }
  func.func @transform_2(%arg0: i32, %arg1: i32, %arg2: i32) -> (i32, i32) {
    %c0_i32 = arith.constant 0 : i32
    %c0_i32_0 = arith.constant 0 : i32
    return %c0_i32, %arg1 : i32, i32
  }
  func.func @transform_3(%arg0: i32, %arg1: i32, %arg2: i32) -> (i32, i32) {
    %c0_i32 = arith.constant 0 : i32
    return %arg0, %arg1 : i32, i32
  }
}

</mosaic_0001>

<llo_original>
// kernel: self_attention_layer_forward.7
$region0: #{self_attention_layer_forward.7}
  #allocation0 [shape = 'u32[]', space=smem, size = 0x4, offset = 0x4, fixed_abs, tag = 'smem constant byte address 0x4 - core index']
  #allocation1 [shape = 'u32[144,128]{1,0:T(1,128)}', space=vmem, size = 0x12000, scoped, tag = 'internal scratch']
  #allocation2 [shape = 'f32[16,96]{1,0:T(8,128)}', space=vmem, size = 0x2000, scoped, tag = 'scratch operand']
  %s0 = inlined_call_operand.vmem [shape: bf16[16,32], index: 0, kind: input, shape index: {}]
  %s1 = inlined_call_operand.vmem [shape: bf16[32,96], index: 1, kind: input, shape index: {}]
  %s2 = inlined_call_operand.vmem [shape: f32[1,96], index: 2, kind: input, shape index: {}]
  %s3 = inlined_call_operand.vmem [shape: bf16[16,96], index: 3, kind: output, shape index: {}]
  %s4 = sld [smem:[#allocation0]]
  $region30: #{self_attention_layer_forward.7} parent=0
    _
  %s6 = ssub.s32 1, %s4
  %s7 = scalar_select 0, %s6, %s4
  // Predicated region
  $region2: #{self_attention_layer_forward.7} parent=0 // pred_check
    _
  $region3: #{self_attention_layer_forward.7} parent=0 // pred_check_branch
    %9 = sbr.rel (0) target = $region5
  $region4: #{self_attention_layer_forward.7} parent=0 // pred_region
    _
  $region5: #{self_attention_layer_forward.7} parent=0 // pred_fallthru
    _
  // Predicated region
  $region6: #{self_attention_layer_forward.7} parent=0 // pred_check
    _
  $region7: #{self_attention_layer_forward.7} parent=0 // pred_check_branch
    %11 = sbr.rel (0) target = $region9
  $region8: #{self_attention_layer_forward.7} parent=0 // pred_region
    _
  $region9: #{self_attention_layer_forward.7} parent=0 // pred_fallthru
    _
  // Predicated region
  $region10: #{self_attention_layer_forward.7} parent=0 // pred_check
    _
  $region11: #{self_attention_layer_forward.7} parent=0 // pred_check_branch
    %13 = sbr.rel (0) target = $region13
  $region12: #{self_attention_layer_forward.7} parent=0 // pred_region
    _
  $region13: #{self_attention_layer_forward.7} parent=0 // pred_fallthru
    _
  %p15 = scmp.eq.s32.totalorder 0, 0
  // Predicated region
  $region14: #{self_attention_layer_forward.7} parent=0 // pred_check
    %p16 = pneg %p15
  $region15: #{self_attention_layer_forward.7} parent=0 // pred_check_branch
    %18 = sbr.rel (%p16) target = $region17
  $region16: #{self_attention_layer_forward.7} parent=0 // pred_region
    %vm19 = vcmask 785408
    %20 = vst.msk [vmem:[#allocation2] sm:$0xff] %vm19, 0.0
    %21 = vst.msk [vmem:[#allocation2 + $0x8] sm:$0xff] %vm19, 0.0
  $region17: #{self_attention_layer_forward.7} parent=0 // pred_fallthru
    _
  %v22 = vld [vmem:[#allocation2] sm:$0xff]
  %v23 = vld [vmem:[#allocation2 + $0x8] sm:$0xff]
  %v24 = vld [vmem:[%s0] sm:$0xf]
  %v25 = vld [vmem:[%s0 + $0x4] sm:$0xf]
  %v26 = vld [vmem:[%s1] sm:$0xf]
  %v27 = vld [vmem:[%s1 + $0x4] sm:$0xf]
  %v28 = vld [vmem:[%s1 + $0x8] sm:$0xf]
  %v29 = vld [vmem:[%s1 + $0xc] sm:$0xf]
  %v32 = vunpack.c.l.b16 %v24
  %v33 = vunpack.c.l.b16 %v25
  %v34 = vpack.c.b16 %v33, %v32
  %v39 = vunpack.c.l.b16 %v26
  %v40 = vunpack.c.l.b16 %v27
  %v41 = vunpack.c.l.b16 %v28
  %v42 = vunpack.c.l.b16 %v29
  %v43 = vpack.c.b16 %v40, %v39
  %v44 = vpack.c.b16 %v42, %v41
  %vm47 = vcmask 261120
  %v49 = vsel %vm47, %v34, 0
  %51 = vmatprep.subr.bf16.mxu0 0
  %52 = vmatpush1.bf16.msra.mxu0 0
  %53 = vmatprep.subr.bf16.mxu0 0
  %54 = vmatpush1.bf16.msra.mxu0 0
  %55 = vmatprep.subr.bf16.mxu0 0
  %56 = vmatpush1.bf16.msra.mxu0 0
  %57 = vmatprep.subr.bf16.mxu0 0
  %58 = vmatpush1.bf16.msra.mxu0 0
  %59 = vmatprep.subr.bf16.mxu0 0
  %60 = vmatpush1.bf16.msra.mxu0 0
  %61 = vmatprep.subr.bf16.mxu0 0
  %62 = vmatpush1.bf16.msra.mxu0 0
  %63 = vmatprep.subr.bf16.mxu0 0
  %64 = vmatpush1.bf16.msra.mxu0 %v44
  %65 = vmatprep.subr.bf16.mxu0 0
  %66 = vmatpush1.bf16.msra.mxu0 %v43
  %67 = vmatprep.subr.bf16.mxu0 0
  %68 = vmatpush2.bf16.msra.mxu0 0
  %69 = vmatprep.subr.bf16.mxu0 0
  %70 = vmatpush2.bf16.msra.mxu0 0
  %71 = vmatprep.subr.bf16.mxu0 0
  %72 = vmatpush2.bf16.msra.mxu0 0
  %73 = vmatprep.subr.bf16.mxu0 0
  %74 = vmatpush2.bf16.msra.mxu0 0
  %75 = vmatprep.subr.bf16.mxu0 0
  %76 = vmatpush2.bf16.msra.mxu0 0
  %77 = vmatprep.subr.bf16.mxu0 0
  %78 = vmatpush2.bf16.msra.mxu0 0
  %79 = vmatprep.subr.bf16.mxu0 0
  %80 = vmatpush2.bf16.msra.mxu0 0
  %81 = vmatprep.subr.bf16.mxu0 0
  %82 = vmatpush2.bf16.msra.mxu0 0
  %83 = vmatprep.mubr.bf16.mxu0 0
  %84 = vmatmul.mubr.bf16.gmra.mxu0 %v49
  %v85 = vpop.f32.mrf.mxu0
  %v86 = vadd.f32 0.0, %v85
  %v87 = vpop.f32.mrf.mxu0
  %v88 = vpop.f32.mrf.mxu0
  %v89 = vadd.f32 0.0, %v88
  %v90 = vpop.f32.mrf.mxu0
  %91 = vdwg.mxu0
  %v92 = vadd.f32 %v22, %v86
  %v93 = vadd.f32 %v23, %v89
  %vm94 = vcmask 785408
  %95 = vst.msk [vmem:[#allocation2] sm:$0xff] %vm94, %v92
  %96 = vst.msk [vmem:[#allocation2 + $0x8] sm:$0xff] %vm94, %v93
  // Predicated region
  $region18: #{self_attention_layer_forward.7} parent=0 // pred_check
    %p97 = pneg %p15
  $region19: #{self_attention_layer_forward.7} parent=0 // pred_check_branch
    %99 = sbr.rel (%p97) target = $region21
  $region20: #{self_attention_layer_forward.7} parent=0 // pred_region
    %v100 = vld [vmem:[#allocation2] sm:$0xff]
    %v101 = vld [vmem:[#allocation2 + $0x8] sm:$0xff]
    %v102 = vld [vmem:[%s2] sm:$0x1]
    %v104 = vlaneseq
    %v105 = vshrl.u32 %v104, 7
    %v106 = vsub.s32 0, %v105
    %v107 = vrot.slane %v102, %v106
    %v109 = vadd.f32 %v100, %v107
    %v110 = vadd.f32 %v101, %v107
    %v111 = vpack.c.bf16 %v110, %v109
    %v113 = vunpack.c.l.b16 %v111
    %v114 = vunpack.c.h.b16 %v111
    %v115 = vpack.c.b16 %v113, %v113
    %v116 = vpack.c.b16 %v114, %v114
    %vm119 = vcmask 781312
    %120 = vst.msk [vmem:[%s3] sm:$0xf] %vm119, %v115
    %121 = vst.msk [vmem:[%s3 + $0x4] sm:$0xf] %vm119, %v116
  $region21: #{self_attention_layer_forward.7} parent=0 // pred_fallthru
    _
  // Predicated region
  $region22: #{self_attention_layer_forward.7} parent=0 // pred_check
    _
  $region23: #{self_attention_layer_forward.7} parent=0 // pred_check_branch
    %123 = sbr.rel (0) target = $region25
  $region24: #{self_attention_layer_forward.7} parent=0 // pred_region
    _
  $region25: #{self_attention_layer_forward.7} parent=0 // pred_fallthru
    _
  // Predicated region
  $region26: #{self_attention_layer_forward.7} parent=0 // pred_check
    _
  $region27: #{self_attention_layer_forward.7} parent=0 // pred_check_branch
    %125 = sbr.rel (0) target = $region29
  $region28: #{self_attention_layer_forward.7} parent=0 // pred_region
    _
  $region29: #{self_attention_layer_forward.7} parent=0 // pred_fallthru
    _

// kernel: self_attention_layer_forward.8
$region0: #{self_attention_layer_forward.8}
  #allocation0 [shape = 'u32[]', space=smem, size = 0x4, offset = 0x4, fixed_abs, tag = 'smem constant byte address 0x4 - core index']
  #allocation1 [shape = 'u32[144,128]{1,0:T(1,128)}', space=vmem, size = 0x12000, scoped, tag = 'internal scratch']
  #allocation2 [shape = 'f32[1,8,1]{2,1,0:T(8,128)}', space=vmem, size = 0x1000, scoped, tag = 'scratch operand']
  #allocation3 [shape = 'f32[1,8,1]{2,1,0:T(8,128)}', space=vmem, size = 0x1000, scoped, tag = 'scratch operand']
  #allocation4 [shape = 'f32[1,8,8]{2,1,0:T(8,128)}', space=vmem, size = 0x1000, scoped, tag = 'scratch operand']
  %s0 = inlined_call_operand.vmem [shape: bf16[8,8,8], index: 0, kind: input, shape index: {}]
  %s1 = inlined_call_operand.vmem [shape: bf16[8,8,8], index: 1, kind: input, shape index: {}]
  %s2 = inlined_call_operand.vmem [shape: bf16[8,8,8], index: 2, kind: input, shape index: {}]
  %s3 = inlined_call_operand.vmem [shape: bf16[8,8,8], index: 3, kind: output, shape index: {}]
  %s4 = sld [smem:[#allocation0]]
  $region53: #{self_attention_layer_forward.8} parent=0
    _
  %s6 = ssub.s32 1, %s4
  %s7 = scalar_select 0, %s6, %s4
  loop: start=0, step=1, limit=10
  $region2: #{self_attention_layer_forward.8} parent=0 // loop_pre_header
    _
  $region3: #{self_attention_layer_forward.8} parent=0 // loop_header
    %s9 = sphi 0, %s13
    %p10 = scmp.ge.s32.totalorder %s9, 10
    %s16 = sphi 0, %s35
    %s17 = sphi 0, %s31
    %s18 = sphi 0, %s27
    %s19 = sphi 0, %s16
    %s20 = sphi 0, %s17
    %s21 = sphi 0, %s18
    %s22 = sphi 0, %s19
    %s23 = sphi 0, %s20
    %s24 = sphi 0, %s21
    %s40 = sphi 0, %s42
    %s43 = sphi 0, %s40
    %s44 = sphi 0, %s43
    %s60 = sphi 0, %s44
    %s68 = sphi 0, %s70
    %s71 = sphi 0, %s68
    %s72 = sphi 0, %s71
    %s88 = sphi 0, %s72
    %s96 = sphi 0, %s98
    %s99 = sphi 0, %s96
    %s100 = sphi 0, %s99
    %s116 = sphi 0, %s100
    %s124 = sphi 0, %s126
    %s127 = sphi 0, %s124
    %s128 = sphi 0, %s127
    %s144 = sphi 0, %s128
  $region4: #{self_attention_layer_forward.8} parent=0 // loop_header_branch
    %12 = sbr.rel (%p10) target = $region8
  $region5: #{self_attention_layer_forward.8} parent=0 // loop_body
    %s14 = ssub.s32 %s9, 1
    %s15 = ssub.s32 %s9, 2
    %s25 = sadd.s32 1, %s18
    %p26 = scmp.ge.s32.totalorder %s25, 1
    %s27 = scalar_select %p26, 0, %s25
    %s28 = sadd.s32 1, %s17
    %s29 = scalar_select %p26, %s28, %s17
    %p30 = scmp.ge.s32.totalorder %s29, 1
    %s31 = scalar_select %p30, 0, %s29
    %s32 = sadd.s32 1, %s16
    %s33 = scalar_select %p30, %s32, %s16
    %p34 = scmp.ge.s32.totalorder %s33, 8
    %s35 = scalar_select %p34, 0, %s33
    %s36 = ssub.s32 %s16, %s35
    %s37 = ssub.s32 %s17, %s31
    %s38 = sor.u32 %s36, %s37
    %p39 = scmp.eq.s32.totalorder %s38, 0
    %s41 = sadd.s32 %s40, 1
    %s42 = scalar_select %p39, %s40, %s41
    %p45 = pneg %p39
    %p46 = scmp.eq.s32.totalorder %s9, 7
    %p47 = por %p45, %p46
    %p48 = scmp.ne.s32.totalorder %s40, %s43
    %p49 = scmp.eq.s32.totalorder %s9, 0
    %p50 = por %p48, %p49
    %p51 = scmp.ne.s32.totalorder %s40, %s43
    %p52 = scmp.eq.s32.totalorder %s14, 7
    %p53 = por %p51, %p52
    %p54 = scmp.ne.s32.totalorder %s43, %s44
    %p55 = scmp.eq.s32.totalorder %s14, 0
    %p56 = por %p54, %p55
    %p57 = scmp.ne.s32.totalorder %s43, %s44
    %p58 = scmp.eq.s32.totalorder %s15, 7
    %p59 = por %p57, %p58
    %p61 = scmp.ne.s32.totalorder %s44, %s60
    %p62 = scmp.eq.s32.totalorder %s15, 0
    %p63 = por %p61, %p62
    %s64 = ssub.s32 %s16, %s35
    %s65 = ssub.s32 %s18, %s27
    %s66 = sor.u32 %s64, %s65
    %p67 = scmp.eq.s32.totalorder %s66, 0
    %s69 = sadd.s32 %s68, 1
    %s70 = scalar_select %p67, %s68, %s69
    %p73 = pneg %p67
    %p74 = scmp.eq.s32.totalorder %s9, 7
    %p75 = por %p73, %p74
    %p76 = scmp.ne.s32.totalorder %s68, %s71
    %p77 = scmp.eq.s32.totalorder %s9, 0
    %p78 = por %p76, %p77
    %p79 = scmp.ne.s32.totalorder %s68, %s71
    %p80 = scmp.eq.s32.totalorder %s14, 7
    %p81 = por %p79, %p80
    %p82 = scmp.ne.s32.totalorder %s71, %s72
    %p83 = scmp.eq.s32.totalorder %s14, 0
    %p84 = por %p82, %p83
    %p85 = scmp.ne.s32.totalorder %s71, %s72
    %p86 = scmp.eq.s32.totalorder %s15, 7
    %p87 = por %p85, %p86
    %p89 = scmp.ne.s32.totalorder %s72, %s88
    %p90 = scmp.eq.s32.totalorder %s15, 0
    %p91 = por %p89, %p90
    %s92 = ssub.s32 %s16, %s35
    %s93 = ssub.s32 %s18, %s27
    %s94 = sor.u32 %s92, %s93
    %p95 = scmp.eq.s32.totalorder %s94, 0
    %s97 = sadd.s32 %s96, 1
    %s98 = scalar_select %p95, %s96, %s97
    %p101 = pneg %p95
    %p102 = scmp.eq.s32.totalorder %s9, 7
    %p103 = por %p101, %p102
    %p104 = scmp.ne.s32.totalorder %s96, %s99
    %p105 = scmp.eq.s32.totalorder %s9, 0
    %p106 = por %p104, %p105
    %p107 = scmp.ne.s32.totalorder %s96, %s99
    %p108 = scmp.eq.s32.totalorder %s14, 7
    %p109 = por %p107, %p108
    %p110 = scmp.ne.s32.totalorder %s99, %s100
    %p111 = scmp.eq.s32.totalorder %s14, 0
    %p112 = por %p110, %p111
    %p113 = scmp.ne.s32.totalorder %s99, %s100
    %p114 = scmp.eq.s32.totalorder %s15, 7
    %p115 = por %p113, %p114
    %p117 = scmp.ne.s32.totalorder %s100, %s116
    %p118 = scmp.eq.s32.totalorder %s15, 0
    %p119 = por %p117, %p118
    %s120 = ssub.s32 %s16, %s35
    %s121 = ssub.s32 %s17, %s31
    %s122 = sor.u32 %s120, %s121
    %p123 = scmp.eq.s32.totalorder %s122, 0
    %s125 = sadd.s32 %s124, 1
    %s126 = scalar_select %p123, %s124, %s125
    %p129 = pneg %p123
    %p130 = scmp.eq.s32.totalorder %s9, 7
    %p131 = por %p129, %p130
    %p132 = scmp.ne.s32.totalorder %s124, %s127
    %p133 = scmp.eq.s32.totalorder %s9, 0
    %p134 = por %p132, %p133
    %p135 = scmp.ne.s32.totalorder %s124, %s127
    %p136 = scmp.eq.s32.totalorder %s14, 7
    %p137 = por %p135, %p136
    %p138 = scmp.ne.s32.totalorder %s127, %s128
    %p139 = scmp.eq.s32.totalorder %s14, 0
    %p140 = por %p138, %p139
    %p141 = scmp.ne.s32.totalorder %s127, %s128
    %p142 = scmp.eq.s32.totalorder %s15, 7
    %p143 = por %p141, %p142
    %p145 = scmp.ne.s32.totalorder %s128, %s144
    %p146 = scmp.eq.s32.totalorder %s15, 0
    %p147 = por %p145, %p146
    %p148 = scmp.le.s32.totalorder 1, %s9
    %p149 = scmp.lt.s32.totalorder %s9, 9
    %p150 = pnand %p148, %p149
    %p151 = pneg %p150
    // Predicated region
    $region9: #{self_attention_layer_forward.8} parent=5 // pred_check
      _
    $region10: #{self_attention_layer_forward.8} parent=5 // pred_check_branch
      %153 = sbr.rel (%p150) target = $region12
    $region11: #{self_attention_layer_forward.8} parent=5 // pred_region
      %s154 = ssub.s32 %s9, 1
    $region12: #{self_attention_layer_forward.8} parent=5 // pred_fallthru
      _
    %p155 = scmp.lt.s32.totalorder %s9, 8
    // Predicated region
    $region13: #{self_attention_layer_forward.8} parent=5 // pred_check
      %p156 = pneg %p155
    $region14: #{self_attention_layer_forward.8} parent=5 // pred_check_branch
      %158 = sbr.rel (%p156) target = $region16
    $region15: #{self_attention_layer_forward.8} parent=5 // pred_region
      // Predicated region
      $region17: #{self_attention_layer_forward.8} parent=15 // pred_check
        %p159 = pneg %p50
      $region18: #{self_attention_layer_forward.8} parent=15 // pred_check_branch
        %161 = sbr.rel (%p159) target = $region20
      $region19: #{self_attention_layer_forward.8} parent=15 // pred_region
        %p162 = scmp.lt.s32.totalorder %s16, 7
        %s163 = scalar_select %p162, %s16, 7
        %p164 = scmp.lt.s32.totalorder %s17, 0
        %s165 = scalar_select %p164, %s17, 0
        %s166 = sadd.s32 %s165, %s163
        %s167 = smul.addr %s166, 4
        %s168 = scalar_lea.vmem %s0, %s167
      $region20: #{self_attention_layer_forward.8} parent=15 // pred_fallthru
        _
      // Predicated region
      $region21: #{self_attention_layer_forward.8} parent=15 // pred_check
        %p169 = pneg %p78
      $region22: #{self_attention_layer_forward.8} parent=15 // pred_check_branch
        %171 = sbr.rel (%p169) target = $region24
      $region23: #{self_attention_layer_forward.8} parent=15 // pred_region
        %p172 = scmp.lt.s32.totalorder %s16, 7
        %s173 = scalar_select %p172, %s16, 7
        %p174 = scmp.lt.s32.totalorder %s18, 0
        %s175 = scalar_select %p174, %s18, 0
        %s176 = sadd.s32 %s175, %s173
        %s177 = smul.addr %s176, 4
        %s178 = scalar_lea.vmem %s1, %s177
      $region24: #{self_attention_layer_forward.8} parent=15 // pred_fallthru
        _
      // Predicated region
      $region25: #{self_attention_layer_forward.8} parent=15 // pred_check
        %p179 = pneg %p106
      $region26: #{self_attention_layer_forward.8} parent=15 // pred_check_branch
        %181 = sbr.rel (%p179) target = $region28
      $region27: #{self_attention_layer_forward.8} parent=15 // pred_region
        %p182 = scmp.lt.s32.totalorder %s16, 7
        %s183 = scalar_select %p182, %s16, 7
        %p184 = scmp.lt.s32.totalorder %s18, 0
        %s185 = scalar_select %p184, %s18, 0
        %s186 = sadd.s32 %s185, %s183
        %s187 = smul.addr %s186, 4
        %s188 = scalar_lea.vmem %s2, %s187
      $region28: #{self_attention_layer_forward.8} parent=15 // pred_fallthru
        _
    $region16: #{self_attention_layer_forward.8} parent=5 // pred_fallthru
      _
    %p189 = scmp.le.s32.totalorder 1, %s9
    %p190 = scmp.lt.s32.totalorder %s9, 9
    %p191 = pnand %p189, %p190
    %p192 = pneg %p191
    // Predicated region
    $region29: #{self_attention_layer_forward.8} parent=5 // pred_check
      _
    $region30: #{self_attention_layer_forward.8} parent=5 // pred_check_branch
      %194 = sbr.rel (%p191) target = $region32
    $region31: #{self_attention_layer_forward.8} parent=5 // pred_region
      %s195 = ssub.s32 %s9, 1
      %p196 = scmp.lt.s32.totalorder %s19, 7
      %s197 = scalar_select %p196, %s19, 7
      %p198 = scmp.lt.s32.totalorder %s20, 0
      %s199 = scalar_select %p198, %s20, 0
      %s200 = sadd.s32 %s199, %s197
      %s201 = smul.addr %s200, 4
      %s202 = scalar_lea.vmem %s0, %s201
      %p203 = pneg %p56
      %p204 = pneg %p53
      %p205 = scmp.lt.s32.totalorder %s19, 7
      %s206 = scalar_select %p205, %s19, 7
      %p207 = scmp.lt.s32.totalorder %s21, 0
      %s208 = scalar_select %p207, %s21, 0
      %s209 = sadd.s32 %s208, %s206
      %s210 = smul.addr %s209, 4
      %s211 = scalar_lea.vmem %s1, %s210
      %p212 = pneg %p84
      %p213 = pneg %p81
      %p214 = scmp.lt.s32.totalorder %s19, 7
      %s215 = scalar_select %p214, %s19, 7
      %p216 = scmp.lt.s32.totalorder %s21, 0
      %s217 = scalar_select %p216, %s21, 0
      %s218 = sadd.s32 %s217, %s215
      %s219 = smul.addr %s218, 4
      %s220 = scalar_lea.vmem %s2, %s219
      %p221 = pneg %p112
      %p222 = pneg %p109
      %p223 = pneg %p140
      %p224 = pneg %p137
      %p225 = scmp.lt.s32.totalorder %s19, 7
      %s226 = scalar_select %p225, %s19, 7
      %p227 = scmp.lt.s32.totalorder %s20, 0
      %s228 = scalar_select %p227, %s20, 0
      %s229 = sadd.s32 %s228, %s226
      %s230 = smul.addr %s229, 4
      %s231 = scalar_lea.vmem %s3, %s230
      %p232 = scmp.lt.s32.totalorder %s19, 7
      %s233 = scalar_select %p232, %s19, 7
      %p234 = scmp.lt.s32.totalorder %s20, 0
      %s235 = scalar_select %p234, %s20, 0
      %s236 = sadd.s32 %s235, %s233
      %s237 = smul.addr %s236, 4
      %s238 = scalar_lea.vmem %s0, %s237
      %p239 = scmp.lt.s32.totalorder %s19, 7
      %s240 = scalar_select %p239, %s19, 7
      %p241 = scmp.lt.s32.totalorder %s21, 0
      %s242 = scalar_select %p241, %s21, 0
      %s243 = sadd.s32 %s242, %s240
      %s244 = smul.addr %s243, 4
      %s245 = scalar_lea.vmem %s1, %s244
      %p246 = scmp.lt.s32.totalorder %s19, 7
      %s247 = scalar_select %p246, %s19, 7
      %p248 = scmp.lt.s32.totalorder %s21, 0
      %s249 = scalar_select %p248, %s21, 0
      %s250 = sadd.s32 %s249, %s247
      %s251 = smul.addr %s250, 4
      %s252 = scalar_lea.vmem %s2, %s251
      %p253 = scmp.lt.s32.totalorder %s19, 7
      %s254 = scalar_select %p253, %s19, 7
      %p255 = scmp.lt.s32.totalorder %s20, 0
      %s256 = scalar_select %p255, %s20, 0
      %s257 = sadd.s32 %s256, %s254
      %s258 = smul.addr %s257, 4
      %s259 = scalar_lea.vmem %s3, %s258
      %p261 = scmp.eq.s32.totalorder %s21, 0
      // Predicated region
      $region33: #{self_attention_layer_forward.8} parent=31 // pred_check
        %p262 = pneg %p261
      $region34: #{self_attention_layer_forward.8} parent=31 // pred_check_branch
        %264 = sbr.rel (%p262) target = $region36
      $region35: #{self_attention_layer_forward.8} parent=31 // pred_region
        %vm265 = vcmask 7168
        %266 = vst.msk [vmem:[#allocation2] sm:$0xff] %vm265, -inf
        %267 = vst.msk [vmem:[#allocation3] sm:$0xff] %vm265, 0.0
        %vm268 = vcmask 64512
        %269 = vst.msk [vmem:[#allocation4] sm:$0xff] %vm268, 0.0
      $region36: #{self_attention_layer_forward.8} parent=31 // pred_fallthru
        _
      %v270 = vld [vmem:[%s238] sm:$0xf]
      %v271 = vld [vmem:[%s245] sm:$0xf]
      %vm272 = vcmask 64512
      %v274 = vsel %vm272, %v270, 0
      %v277 = vsel %vm272, %v271, 0
      %279 = vmatprep.subr.bf16.mxu0 0
      %280 = vmatpush1.bf16.xpose.msra.mxu0 0
      %281 = vmatprep.subr.bf16.mxu0 0
      %282 = vmatpush1.bf16.xpose.msra.mxu0 0
      %283 = vmatprep.subr.bf16.mxu0 0
      %284 = vmatpush1.bf16.xpose.msra.mxu0 0
      %285 = vmatprep.subr.bf16.mxu0 0
      %286 = vmatpush1.bf16.xpose.msra.mxu0 0
      %287 = vmatprep.subr.bf16.mxu0 0
      %288 = vmatpush1.bf16.xpose.msra.mxu0 0
      %289 = vmatprep.subr.bf16.mxu0 0
      %290 = vmatpush1.bf16.xpose.msra.mxu0 0
      %291 = vmatprep.subr.bf16.mxu0 0
      %292 = vmatpush1.bf16.xpose.msra.mxu0 0
      %293 = vmatprep.subr.bf16.mxu0 0
      %294 = vmatpush1.bf16.xpose.msra.mxu0 %v277
      %295 = vmatprep.subr.bf16.mxu0 0
      %296 = vmatpush2.bf16.xpose.msra.mxu0 0
      %297 = vmatprep.subr.bf16.mxu0 0
      %298 = vmatpush2.bf16.xpose.msra.mxu0 0
      %299 = vmatprep.subr.bf16.mxu0 0
      %300 = vmatpush2.bf16.xpose.msra.mxu0 0
      %301 = vmatprep.subr.bf16.mxu0 0
      %302 = vmatpush2.bf16.xpose.msra.mxu0 0
      %303 = vmatprep.subr.bf16.mxu0 0
      %304 = vmatpush2.bf16.xpose.msra.mxu0 0
      %305 = vmatprep.subr.bf16.mxu0 0
      %306 = vmatpush2.bf16.xpose.msra.mxu0 0
      %307 = vmatprep.subr.bf16.mxu0 0
      %308 = vmatpush2.bf16.xpose.msra.mxu0 0
      %309 = vmatprep.subr.bf16.mxu0 0
      %310 = vmatpush2.bf16.xpose.msra.mxu0 0
      %311 = vmatprep.mubr.bf16.mxu0 0
      %312 = vmatmul.mubr.bf16.gmra.mxu0 %v274
      %v313 = vpop.f32.mrf.mxu0
      %v314 = vadd.f32 0.0, %v313
      %v315 = vpop.f32.mrf.mxu0
      %v316 = vpop.f32.mrf.mxu0
      %v317 = vpop.f32.mrf.mxu0
      %318 = vdwg.mxu0
      %v319 = vld [vmem:[#allocation2] sm:$0xff]
      %v320 = vsel %vm272, %v314, -inf
      %321 = vmax.xlane.f32.xlu0 %v320
      %v322 = vpop.xlane.xlu0 %321
      %v323 = vmax.f32 %v319, %v322
      %v324 = vsub.f32 %v319, %v323
      %v325 = vmul.f32 %v324, 1.442695
      %v326 = vpow.pop %v325
      %328 = vset.pattern.permute.xlu0 0
      %329 = vperm.xlu0 %328, %v323
      %v330 = vpop.permute.xlu0 %329
      %v332 = vsub.f32 %v314, %v330
      %v333 = vmul.f32 %v332, 1.442695
      %v334 = vpow.pop %v333
      %v335 = vld [vmem:[#allocation3] sm:$0xff]
      %v336 = vmul.f32 %v326, %v335
      %v337 = vsel %vm272, %v334, 0.0
      %338 = vadd.xlane.f32.xlu0 %v337
      %v339 = vpop.xlane.xlu0 %338
      %v340 = vadd.f32 %v336, %v339
      %vm341 = vcmask 7168
      %342 = vst.msk [vmem:[#allocation3] sm:$0xff] %vm341, %v340
      %v343 = vld [vmem:[#allocation4] sm:$0xff]
      %345 = vset.pattern.permute.xlu0 0
      %346 = vperm.xlu0 %345, %v326
      %v347 = vpop.permute.xlu0 %346
      %v349 = vmul.f32 %v347, %v343
      %v350 = vpack.c.bf16 %v334, %v334
      %v351 = vld [vmem:[%s252] sm:$0xf]
      %v353 = vsel %vm272, %v350, 0
      %vm355 = vcmask 1043456
      %v357 = vsel %vm355, %v351, 0
      %359 = vmatprep.subr.bf16.mxu0 0
      %360 = vmatpush1.bf16.msra.mxu0 0
      %361 = vmatprep.subr.bf16.mxu0 0
      %362 = vmatpush1.bf16.msra.mxu0 0
      %363 = vmatprep.subr.bf16.mxu0 0
      %364 = vmatpush1.bf16.msra.mxu0 0
      %365 = vmatprep.subr.bf16.mxu0 0
      %366 = vmatpush1.bf16.msra.mxu0 0
      %367 = vmatprep.subr.bf16.mxu0 0
      %368 = vmatpush1.bf16.msra.mxu0 0
      %369 = vmatprep.subr.bf16.mxu0 0
      %370 = vmatpush1.bf16.msra.mxu0 0
      %371 = vmatprep.subr.bf16.mxu0 0
      %372 = vmatpush1.bf16.msra.mxu0 0
      %373 = vmatprep.subr.bf16.mxu0 0
      %374 = vmatpush1.bf16.msra.mxu0 %v357
      %375 = vmatprep.subr.bf16.mxu0 0
      %376 = vmatpush2.bf16.msra.mxu0 0
      %377 = vmatprep.subr.bf16.mxu0 0
      %378 = vmatpush2.bf16.msra.mxu0 0
      %379 = vmatprep.subr.bf16.mxu0 0
      %380 = vmatpush2.bf16.msra.mxu0 0
      %381 = vmatprep.subr.bf16.mxu0 0
      %382 = vmatpush2.bf16.msra.mxu0 0
      %383 = vmatprep.subr.bf16.mxu0 0
      %384 = vmatpush2.bf16.msra.mxu0 0
      %385 = vmatprep.subr.bf16.mxu0 0
      %386 = vmatpush2.bf16.msra.mxu0 0
      %387 = vmatprep.subr.bf16.mxu0 0
      %388 = vmatpush2.bf16.msra.mxu0 0
      %389 = vmatprep.subr.bf16.mxu0 0
      %390 = vmatpush2.bf16.msra.mxu0 0
      %391 = vmatprep.mubr.bf16.mxu0 0
      %392 = vmatmul.mubr.bf16.gmra.mxu0 %v353
      %v393 = vpop.f32.mrf.mxu0
      %v394 = vadd.f32 0.0, %v393
      %v395 = vpop.f32.mrf.mxu0
      %v396 = vpop.f32.mrf.mxu0
      %v397 = vpop.f32.mrf.mxu0
      %398 = vdwg.mxu0
      %v399 = vadd.f32 %v349, %v394
      %400 = vst.msk [vmem:[#allocation4] sm:$0xff] %vm272, %v399
      %401 = vst.msk [vmem:[#allocation2] sm:$0xff] %vm341, %v323
      // Predicated region
      $region37: #{self_attention_layer_forward.8} parent=31 // pred_check
        %p402 = pneg %p261
      $region38: #{self_attention_layer_forward.8} parent=31 // pred_check_branch
        %404 = sbr.rel (%p402) target = $region40
      $region39: #{self_attention_layer_forward.8} parent=31 // pred_region
        %v405 = vld [vmem:[#allocation3] sm:$0xff]
        %v406 = vrcp.pop %v405
        %v407 = vld [vmem:[#allocation4] sm:$0xff]
        %409 = vset.pattern.permute.xlu0 0
        %410 = vperm.xlu0 %409, %v406
        %v411 = vpop.permute.xlu0 %410
        %v413 = vmul.f32 %v407, %v411
        %v414 = vpack.c.bf16 %v413, %v413
        %vm415 = vcmask 60416
        %416 = vst.msk [vmem:[%s259] sm:$0xf] %vm415, %v414
      $region40: #{self_attention_layer_forward.8} parent=31 // pred_fallthru
        _
      %p417 = scmp.lt.s32.totalorder %s19, 7
      %s418 = scalar_select %p417, %s19, 7
      %p419 = scmp.lt.s32.totalorder %s20, 0
      %s420 = scalar_select %p419, %s20, 0
      %s421 = sadd.s32 %s420, %s418
      %s422 = smul.addr %s421, 4
      %s423 = scalar_lea.vmem %s3, %s422
      // Predicated region
      $region41: #{self_attention_layer_forward.8} parent=31 // pred_check
        %p424 = pneg %p137
      $region42: #{self_attention_layer_forward.8} parent=31 // pred_check_branch
        %426 = sbr.rel (%p424) target = $region44
      $region43: #{self_attention_layer_forward.8} parent=31 // pred_region
        _
      $region44: #{self_attention_layer_forward.8} parent=31 // pred_fallthru
        _
    $region32: #{self_attention_layer_forward.8} parent=5 // pred_fallthru
      _
    %p427 = scmp.le.s32.totalorder 2, %s9
    // Predicated region
    $region45: #{self_attention_layer_forward.8} parent=5 // pred_check
      %p428 = pneg %p427
    $region46: #{self_attention_layer_forward.8} parent=5 // pred_check_branch
      %430 = sbr.rel (%p428) target = $region48
    $region47: #{self_attention_layer_forward.8} parent=5 // pred_region
      %s431 = ssub.s32 %s9, 2
      // Predicated region
      $region49: #{self_attention_layer_forward.8} parent=47 // pred_check
        %p432 = pneg %p143
      $region50: #{self_attention_layer_forward.8} parent=47 // pred_check_branch
        %434 = sbr.rel (%p432) target = $region52
      $region51: #{self_attention_layer_forward.8} parent=47 // pred_region
        %p435 = scmp.lt.s32.totalorder %s22, 7
        %s436 = scalar_select %p435, %s22, 7
        %p437 = scmp.lt.s32.totalorder %s23, 0
        %s438 = scalar_select %p437, %s23, 0
        %s439 = sadd.s32 %s438, %s436
        %s440 = smul.addr %s439, 4
        %s441 = scalar_lea.vmem %s3, %s440
      $region52: #{self_attention_layer_forward.8} parent=47 // pred_fallthru
        _
    $region48: #{self_attention_layer_forward.8} parent=5 // pred_fallthru
      _
  $region6: #{self_attention_layer_forward.8} parent=0 // loop_footer
    %s13 = sadd.s32 1, %s9
  $region7: #{self_attention_layer_forward.8} parent=0 // loop_footer_branch
    %8 = sbr.rel target = $region3
  $region8: #{self_attention_layer_forward.8} parent=0 // loop_exit
    _

// kernel: self_attention_layer_forward.9
$region0: #{self_attention_layer_forward.9}
  #allocation0 [shape = 'u32[]', space=smem, size = 0x4, offset = 0x4, fixed_abs, tag = 'smem constant byte address 0x4 - core index']
  #allocation1 [shape = 'u32[144,128]{1,0:T(1,128)}', space=vmem, size = 0x12000, scoped, tag = 'internal scratch']
  #allocation2 [shape = 'f32[16,32]{1,0:T(8,128)}', space=vmem, size = 0x2000, scoped, tag = 'scratch operand']
  %s0 = inlined_call_operand.vmem [shape: bf16[16,32], index: 0, kind: input, shape index: {}]
  %s1 = inlined_call_operand.vmem [shape: bf16[32,32], index: 1, kind: input, shape index: {}]
  %s2 = inlined_call_operand.vmem [shape: f32[1,32], index: 2, kind: input, shape index: {}]
  %s3 = inlined_call_operand.vmem [shape: f32[16,32], index: 3, kind: output, shape index: {}]
  %s4 = sld [smem:[#allocation0]]
  $region30: #{self_attention_layer_forward.9} parent=0
    _
  %s6 = ssub.s32 1, %s4
  %s7 = scalar_select 0, %s6, %s4
  // Predicated region
  $region2: #{self_attention_layer_forward.9} parent=0 // pred_check
    _
  $region3: #{self_attention_layer_forward.9} parent=0 // pred_check_branch
    %9 = sbr.rel (0) target = $region5
  $region4: #{self_attention_layer_forward.9} parent=0 // pred_region
    _
  $region5: #{self_attention_layer_forward.9} parent=0 // pred_fallthru
    _
  // Predicated region
  $region6: #{self_attention_layer_forward.9} parent=0 // pred_check
    _
  $region7: #{self_attention_layer_forward.9} parent=0 // pred_check_branch
    %11 = sbr.rel (0) target = $region9
  $region8: #{self_attention_layer_forward.9} parent=0 // pred_region
    _
  $region9: #{self_attention_layer_forward.9} parent=0 // pred_fallthru
    _
  // Predicated region
  $region10: #{self_attention_layer_forward.9} parent=0 // pred_check
    _
  $region11: #{self_attention_layer_forward.9} parent=0 // pred_check_branch
    %13 = sbr.rel (0) target = $region13
  $region12: #{self_attention_layer_forward.9} parent=0 // pred_region
    _
  $region13: #{self_attention_layer_forward.9} parent=0 // pred_fallthru
    _
  %p15 = scmp.eq.s32.totalorder 0, 0
  // Predicated region
  $region14: #{self_attention_layer_forward.9} parent=0 // pred_check
    %p16 = pneg %p15
  $region15: #{self_attention_layer_forward.9} parent=0 // pred_check_branch
    %18 = sbr.rel (%p16) target = $region17
  $region16: #{self_attention_layer_forward.9} parent=0 // pred_region
    %vm19 = vcmask 261120
    %20 = vst.msk [vmem:[#allocation2] sm:$0xff] %vm19, 0.0
    %21 = vst.msk [vmem:[#allocation2 + $0x8] sm:$0xff] %vm19, 0.0
  $region17: #{self_attention_layer_forward.9} parent=0 // pred_fallthru
    _
  %v22 = vld [vmem:[#allocation2] sm:$0xff]
  %v23 = vld [vmem:[#allocation2 + $0x8] sm:$0xff]
  %v24 = vld [vmem:[%s0] sm:$0xf]
  %v25 = vld [vmem:[%s0 + $0x4] sm:$0xf]
  %v26 = vld [vmem:[%s1] sm:$0xf]
  %v27 = vld [vmem:[%s1 + $0x4] sm:$0xf]
  %v28 = vld [vmem:[%s1 + $0x8] sm:$0xf]
  %v29 = vld [vmem:[%s1 + $0xc] sm:$0xf]
  %v32 = vunpack.c.l.b16 %v24
  %v33 = vunpack.c.l.b16 %v25
  %v34 = vpack.c.b16 %v33, %v32
  %v39 = vunpack.c.l.b16 %v26
  %v40 = vunpack.c.l.b16 %v27
  %v41 = vunpack.c.l.b16 %v28
  %v42 = vunpack.c.l.b16 %v29
  %v43 = vpack.c.b16 %v40, %v39
  %v44 = vpack.c.b16 %v42, %v41
  %vm47 = vcmask 261120
  %v49 = vsel %vm47, %v34, 0
  %51 = vmatprep.subr.bf16.mxu0 0
  %52 = vmatpush1.bf16.msra.mxu0 0
  %53 = vmatprep.subr.bf16.mxu0 0
  %54 = vmatpush1.bf16.msra.mxu0 0
  %55 = vmatprep.subr.bf16.mxu0 0
  %56 = vmatpush1.bf16.msra.mxu0 0
  %57 = vmatprep.subr.bf16.mxu0 0
  %58 = vmatpush1.bf16.msra.mxu0 0
  %59 = vmatprep.subr.bf16.mxu0 0
  %60 = vmatpush1.bf16.msra.mxu0 0
  %61 = vmatprep.subr.bf16.mxu0 0
  %62 = vmatpush1.bf16.msra.mxu0 0
  %63 = vmatprep.subr.bf16.mxu0 0
  %64 = vmatpush1.bf16.msra.mxu0 %v44
  %65 = vmatprep.subr.bf16.mxu0 0
  %66 = vmatpush1.bf16.msra.mxu0 %v43
  %67 = vmatprep.subr.bf16.mxu0 0
  %68 = vmatpush2.bf16.msra.mxu0 0
  %69 = vmatprep.subr.bf16.mxu0 0
  %70 = vmatpush2.bf16.msra.mxu0 0
  %71 = vmatprep.subr.bf16.mxu0 0
  %72 = vmatpush2.bf16.msra.mxu0 0
  %73 = vmatprep.subr.bf16.mxu0 0
  %74 = vmatpush2.bf16.msra.mxu0 0
  %75 = vmatprep.subr.bf16.mxu0 0
  %76 = vmatpush2.bf16.msra.mxu0 0
  %77 = vmatprep.subr.bf16.mxu0 0
  %78 = vmatpush2.bf16.msra.mxu0 0
  %79 = vmatprep.subr.bf16.mxu0 0
  %80 = vmatpush2.bf16.msra.mxu0 0
  %81 = vmatprep.subr.bf16.mxu0 0
  %82 = vmatpush2.bf16.msra.mxu0 0
  %83 = vmatprep.mubr.bf16.mxu0 0
  %84 = vmatmul.mubr.bf16.gmra.mxu0 %v49
  %v85 = vpop.f32.mrf.mxu0
  %v86 = vadd.f32 0.0, %v85
  %v87 = vpop.f32.mrf.mxu0
  %v88 = vpop.f32.mrf.mxu0
  %v89 = vadd.f32 0.0, %v88
  %v90 = vpop.f32.mrf.mxu0
  %91 = vdwg.mxu0
  %v92 = vadd.f32 %v22, %v86
  %v93 = vadd.f32 %v23, %v89
  %94 = vst.msk [vmem:[#allocation2] sm:$0xff] %vm47, %v92
  %95 = vst.msk [vmem:[#allocation2 + $0x8] sm:$0xff] %vm47, %v93
  // Predicated region
  $region18: #{self_attention_layer_forward.9} parent=0 // pred_check
    %p96 = pneg %p15
  $region19: #{self_attention_layer_forward.9} parent=0 // pred_check_branch
    %98 = sbr.rel (%p96) target = $region21
  $region20: #{self_attention_layer_forward.9} parent=0 // pred_region
    %v99 = vld [vmem:[#allocation2] sm:$0xff]
    %v100 = vld [vmem:[#allocation2 + $0x8] sm:$0xff]
    %v101 = vld [vmem:[%s2] sm:$0x1]
    %v103 = vlaneseq
    %v104 = vshrl.u32 %v103, 7
    %v105 = vsub.s32 0, %v104
    %v106 = vrot.slane %v101, %v105
    %v108 = vadd.f32 %v99, %v106
    %v109 = vadd.f32 %v100, %v106
    %110 = vst.msk [vmem:[%s3] sm:$0xff] %vm47, %v108
    %111 = vst.msk [vmem:[%s3 + $0x8] sm:$0xff] %vm47, %v109
  $region21: #{self_attention_layer_forward.9} parent=0 // pred_fallthru
    _
  // Predicated region
  $region22: #{self_attention_layer_forward.9} parent=0 // pred_check
    _
  $region23: #{self_attention_layer_forward.9} parent=0 // pred_check_branch
    %113 = sbr.rel (0) target = $region25
  $region24: #{self_attention_layer_forward.9} parent=0 // pred_region
    _
  $region25: #{self_attention_layer_forward.9} parent=0 // pred_fallthru
    _
  // Predicated region
  $region26: #{self_attention_layer_forward.9} parent=0 // pred_check
    _
  $region27: #{self_attention_layer_forward.9} parent=0 // pred_check_branch
    %115 = sbr.rel (0) target = $region29
  $region28: #{self_attention_layer_forward.9} parent=0 // pred_region
    _
  $region29: #{self_attention_layer_forward.9} parent=0 // pred_fallthru
    _

// kernel: self_attention_layer_forward.10
$region0: #{self_attention_layer_forward.10}
  #allocation0 [shape = 'u32[]', space=smem, size = 0x4, offset = 0x4, fixed_abs, tag = 'smem constant byte address 0x4 - core index']
  #allocation1 [shape = 'u32[144,128]{1,0:T(1,128)}', space=vmem, size = 0x12000, scoped, tag = 'internal scratch']
  %s0 = inlined_call_operand.vmem [shape: f32[16,32], index: 0, kind: input, shape index: {}]
  %s1 = inlined_call_operand.vmem [shape: f32[16,32], index: 1, kind: input, shape index: {}]
  %s2 = inlined_call_operand.vmem [shape: f32[1,32], index: 2, kind: input, shape index: {}]
  %s3 = inlined_call_operand.vmem [shape: f32[1,32], index: 3, kind: input, shape index: {}]
  %s4 = inlined_call_operand.vmem [shape: f32[16,32], index: 4, kind: output, shape index: {}]
  %s5 = sld [smem:[#allocation0]]
  $region26: #{self_attention_layer_forward.10} parent=0
    _
  %s7 = ssub.s32 1, %s5
  %s8 = scalar_select 0, %s7, %s5
  // Predicated region
  $region2: #{self_attention_layer_forward.10} parent=0 // pred_check
    _
  $region3: #{self_attention_layer_forward.10} parent=0 // pred_check_branch
    %10 = sbr.rel (0) target = $region5
  $region4: #{self_attention_layer_forward.10} parent=0 // pred_region
    _
  $region5: #{self_attention_layer_forward.10} parent=0 // pred_fallthru
    _
  // Predicated region
  $region6: #{self_attention_layer_forward.10} parent=0 // pred_check
    _
  $region7: #{self_attention_layer_forward.10} parent=0 // pred_check_branch
    %12 = sbr.rel (0) target = $region9
  $region8: #{self_attention_layer_forward.10} parent=0 // pred_region
    _
  $region9: #{self_attention_layer_forward.10} parent=0 // pred_fallthru
    _
  // Predicated region
  $region10: #{self_attention_layer_forward.10} parent=0 // pred_check
    _
  $region11: #{self_attention_layer_forward.10} parent=0 // pred_check_branch
    %14 = sbr.rel (0) target = $region13
  $region12: #{self_attention_layer_forward.10} parent=0 // pred_region
    _
  $region13: #{self_attention_layer_forward.10} parent=0 // pred_fallthru
    _
  // Predicated region
  $region14: #{self_attention_layer_forward.10} parent=0 // pred_check
    _
  $region15: #{self_attention_layer_forward.10} parent=0 // pred_check_branch
    %16 = sbr.rel (0) target = $region17
  $region16: #{self_attention_layer_forward.10} parent=0 // pred_region
    _
  $region17: #{self_attention_layer_forward.10} parent=0 // pred_fallthru
    _
  %v17 = vld [vmem:[%s0] sm:$0xff]
  %v18 = vld [vmem:[%s0 + $0x8] sm:$0xff]
  %v19 = vld [vmem:[%s1] sm:$0xff]
  %v20 = vld [vmem:[%s1 + $0x8] sm:$0xff]
  %v21 = vadd.f32 %v17, %v19
  %v22 = vadd.f32 %v18, %v20
  %vm23 = vcmask 261120
  %v24 = vsel %vm23, %v21, 0.0
  %25 = vadd.xlane.f32.xlu0 %v24
  %v26 = vpop.xlane.xlu0 %25
  %v27 = vsel %vm23, %v22, 0.0
  %28 = vadd.xlane.f32.xlu0 %v27
  %v29 = vpop.xlane.xlu0 %28
  %v30 = vrcp.pop 32.0
  %v31 = vmul.f32 %v26, %v30
  %v32 = vmul.f32 %v29, %v30
  %v33 = vsub.f32 %v21, %v31
  %v34 = vsub.f32 %v22, %v32
  %v35 = vmul.f32 %v33, %v33
  %v36 = vmul.f32 %v34, %v34
  %v37 = vsel %vm23, %v35, 0.0
  %38 = vadd.xlane.f32.xlu0 %v37
  %v39 = vpop.xlane.xlu0 %38
  %v40 = vsel %vm23, %v36, 0.0
  %41 = vadd.xlane.f32.xlu0 %v40
  %v42 = vpop.xlane.xlu0 %41
  %v43 = vmul.f32 %v39, %v30
  %v44 = vmul.f32 %v42, %v30
  %v45 = vadd.f32 %v43, 1e-05
  %v46 = vadd.f32 %v44, 1e-05
  %v47 = vrsqrt.pop %v45
  %v48 = vrsqrt.pop %v46
  %v49 = vmul.f32 %v33, %v47
  %v50 = vmul.f32 %v34, %v48
  %v51 = vld [vmem:[%s2] sm:$0x1]
  %v53 = vlaneseq
  %v54 = vshrl.u32 %v53, 7
  %v55 = vsub.s32 0, %v54
  %v56 = vrot.slane %v51, %v55
  %v58 = vmul.f32 %v49, %v56
  %v59 = vmul.f32 %v50, %v56
  %v60 = vld [vmem:[%s3] sm:$0x1]
  %v62 = vlaneseq
  %v63 = vshrl.u32 %v62, 7
  %v64 = vsub.s32 0, %v63
  %v65 = vrot.slane %v60, %v64
  %v67 = vadd.f32 %v58, %v65
  %v68 = vadd.f32 %v59, %v65
  %69 = vst.msk [vmem:[%s4] sm:$0xff] %vm23, %v67
  %70 = vst.msk [vmem:[%s4 + $0x8] sm:$0xff] %vm23, %v68
  // Predicated region
  $region18: #{self_attention_layer_forward.10} parent=0 // pred_check
    _
  $region19: #{self_attention_layer_forward.10} parent=0 // pred_check_branch
    %72 = sbr.rel (0) target = $region21
  $region20: #{self_attention_layer_forward.10} parent=0 // pred_region
    _
  $region21: #{self_attention_layer_forward.10} parent=0 // pred_fallthru
    _
  // Predicated region
  $region22: #{self_attention_layer_forward.10} parent=0 // pred_check
    _
  $region23: #{self_attention_layer_forward.10} parent=0 // pred_check_branch
    %74 = sbr.rel (0) target = $region25
  $region24: #{self_attention_layer_forward.10} parent=0 // pred_region
    _
  $region25: #{self_attention_layer_forward.10} parent=0 // pred_fallthru
    _

// kernel: self_attention_layer_forward.11
$region0: #{self_attention_layer_forward.11}
  #allocation0 [shape = 'u32[]', space=smem, size = 0x4, offset = 0x4, fixed_abs, tag = 'smem constant byte address 0x4 - core index']
  #allocation1 [shape = 'u32[144,128]{1,0:T(1,128)}', space=vmem, size = 0x12000, scoped, tag = 'internal scratch']
  #allocation2 [shape = 'f32[16,64]{1,0:T(8,128)}', space=vmem, size = 0x2000, scoped, tag = 'scratch operand']
  %s0 = inlined_call_operand.vmem [shape: bf16[16,32], index: 0, kind: input, shape index: {}]
  %s1 = inlined_call_operand.vmem [shape: bf16[32,64], index: 1, kind: input, shape index: {}]
  %s2 = inlined_call_operand.vmem [shape: f32[1,64], index: 2, kind: input, shape index: {}]
  %s3 = inlined_call_operand.vmem [shape: bf16[16,64], index: 3, kind: output, shape index: {}]
  %s4 = sld [smem:[#allocation0]]
  $region30: #{self_attention_layer_forward.11} parent=0
    _
  %s6 = ssub.s32 1, %s4
  %s7 = scalar_select 0, %s6, %s4
  // Predicated region
  $region2: #{self_attention_layer_forward.11} parent=0 // pred_check
    _
  $region3: #{self_attention_layer_forward.11} parent=0 // pred_check_branch
    %9 = sbr.rel (0) target = $region5
  $region4: #{self_attention_layer_forward.11} parent=0 // pred_region
    _
  $region5: #{self_attention_layer_forward.11} parent=0 // pred_fallthru
    _
  // Predicated region
  $region6: #{self_attention_layer_forward.11} parent=0 // pred_check
    _
  $region7: #{self_attention_layer_forward.11} parent=0 // pred_check_branch
    %11 = sbr.rel (0) target = $region9
  $region8: #{self_attention_layer_forward.11} parent=0 // pred_region
    _
  $region9: #{self_attention_layer_forward.11} parent=0 // pred_fallthru
    _
  // Predicated region
  $region10: #{self_attention_layer_forward.11} parent=0 // pred_check
    _
  $region11: #{self_attention_layer_forward.11} parent=0 // pred_check_branch
    %13 = sbr.rel (0) target = $region13
  $region12: #{self_attention_layer_forward.11} parent=0 // pred_region
    _
  $region13: #{self_attention_layer_forward.11} parent=0 // pred_fallthru
    _
  %p15 = scmp.eq.s32.totalorder 0, 0
  // Predicated region
  $region14: #{self_attention_layer_forward.11} parent=0 // pred_check
    %p16 = pneg %p15
  $region15: #{self_attention_layer_forward.11} parent=0 // pred_check_branch
    %18 = sbr.rel (%p16) target = $region17
  $region16: #{self_attention_layer_forward.11} parent=0 // pred_region
    %vm19 = vcmask 523264
    %20 = vst.msk [vmem:[#allocation2] sm:$0xff] %vm19, 0.0
    %21 = vst.msk [vmem:[#allocation2 + $0x8] sm:$0xff] %vm19, 0.0
  $region17: #{self_attention_layer_forward.11} parent=0 // pred_fallthru
    _
  %v22 = vld [vmem:[#allocation2] sm:$0xff]
  %v23 = vld [vmem:[#allocation2 + $0x8] sm:$0xff]
  %v24 = vld [vmem:[%s0] sm:$0xf]
  %v25 = vld [vmem:[%s0 + $0x4] sm:$0xf]
  %v26 = vld [vmem:[%s1] sm:$0xf]
  %v27 = vld [vmem:[%s1 + $0x4] sm:$0xf]
  %v28 = vld [vmem:[%s1 + $0x8] sm:$0xf]
  %v29 = vld [vmem:[%s1 + $0xc] sm:$0xf]
  %v32 = vunpack.c.l.b16 %v24
  %v33 = vunpack.c.l.b16 %v25
  %v34 = vpack.c.b16 %v33, %v32
  %v39 = vunpack.c.l.b16 %v26
  %v40 = vunpack.c.l.b16 %v27
  %v41 = vunpack.c.l.b16 %v28
  %v42 = vunpack.c.l.b16 %v29
  %v43 = vpack.c.b16 %v40, %v39
  %v44 = vpack.c.b16 %v42, %v41
  %vm47 = vcmask 261120
  %v49 = vsel %vm47, %v34, 0
  %51 = vmatprep.subr.bf16.mxu0 0
  %52 = vmatpush1.bf16.msra.mxu0 0
  %53 = vmatprep.subr.bf16.mxu0 0
  %54 = vmatpush1.bf16.msra.mxu0 0
  %55 = vmatprep.subr.bf16.mxu0 0
  %56 = vmatpush1.bf16.msra.mxu0 0
  %57 = vmatprep.subr.bf16.mxu0 0
  %58 = vmatpush1.bf16.msra.mxu0 0
  %59 = vmatprep.subr.bf16.mxu0 0
  %60 = vmatpush1.bf16.msra.mxu0 0
  %61 = vmatprep.subr.bf16.mxu0 0
  %62 = vmatpush1.bf16.msra.mxu0 0
  %63 = vmatprep.subr.bf16.mxu0 0
  %64 = vmatpush1.bf16.msra.mxu0 %v44
  %65 = vmatprep.subr.bf16.mxu0 0
  %66 = vmatpush1.bf16.msra.mxu0 %v43
  %67 = vmatprep.subr.bf16.mxu0 0
  %68 = vmatpush2.bf16.msra.mxu0 0
  %69 = vmatprep.subr.bf16.mxu0 0
  %70 = vmatpush2.bf16.msra.mxu0 0
  %71 = vmatprep.subr.bf16.mxu0 0
  %72 = vmatpush2.bf16.msra.mxu0 0
  %73 = vmatprep.subr.bf16.mxu0 0
  %74 = vmatpush2.bf16.msra.mxu0 0
  %75 = vmatprep.subr.bf16.mxu0 0
  %76 = vmatpush2.bf16.msra.mxu0 0
  %77 = vmatprep.subr.bf16.mxu0 0
  %78 = vmatpush2.bf16.msra.mxu0 0
  %79 = vmatprep.subr.bf16.mxu0 0
  %80 = vmatpush2.bf16.msra.mxu0 0
  %81 = vmatprep.subr.bf16.mxu0 0
  %82 = vmatpush2.bf16.msra.mxu0 0
  %83 = vmatprep.mubr.bf16.mxu0 0
  %84 = vmatmul.mubr.bf16.gmra.mxu0 %v49
  %v85 = vpop.f32.mrf.mxu0
  %v86 = vadd.f32 0.0, %v85
  %v87 = vpop.f32.mrf.mxu0
  %v88 = vpop.f32.mrf.mxu0
  %v89 = vadd.f32 0.0, %v88
  %v90 = vpop.f32.mrf.mxu0
  %91 = vdwg.mxu0
  %v92 = vadd.f32 %v22, %v86
  %v93 = vadd.f32 %v23, %v89
  %vm94 = vcmask 523264
  %95 = vst.msk [vmem:[#allocation2] sm:$0xff] %vm94, %v92
  %96 = vst.msk [vmem:[#allocation2 + $0x8] sm:$0xff] %vm94, %v93
  // Predicated region
  $region18: #{self_attention_layer_forward.11} parent=0 // pred_check
    %p97 = pneg %p15
  $region19: #{self_attention_layer_forward.11} parent=0 // pred_check_branch
    %99 = sbr.rel (%p97) target = $region21
  $region20: #{self_attention_layer_forward.11} parent=0 // pred_region
    %v100 = vld [vmem:[#allocation2] sm:$0xff]
    %v101 = vld [vmem:[#allocation2 + $0x8] sm:$0xff]
    %v102 = vld [vmem:[%s2] sm:$0x1]
    %v104 = vlaneseq
    %v105 = vshrl.u32 %v104, 7
    %v106 = vsub.s32 0, %v105
    %v107 = vrot.slane %v102, %v106
    %v109 = vadd.f32 %v100, %v107
    %v110 = vadd.f32 %v101, %v107
    %v111 = vmax.f32 %v109, 0.0
    %v112 = vmax.f32 %v110, 0.0
    %v113 = vpack.c.bf16 %v112, %v111
    %v115 = vunpack.c.l.b16 %v113
    %v116 = vunpack.c.h.b16 %v113
    %v117 = vpack.c.b16 %v115, %v115
    %v118 = vpack.c.b16 %v116, %v116
    %vm121 = vcmask 519168
    %122 = vst.msk [vmem:[%s3] sm:$0xf] %vm121, %v117
    %123 = vst.msk [vmem:[%s3 + $0x4] sm:$0xf] %vm121, %v118
  $region21: #{self_attention_layer_forward.11} parent=0 // pred_fallthru
    _
  // Predicated region
  $region22: #{self_attention_layer_forward.11} parent=0 // pred_check
    _
  $region23: #{self_attention_layer_forward.11} parent=0 // pred_check_branch
    %125 = sbr.rel (0) target = $region25
  $region24: #{self_attention_layer_forward.11} parent=0 // pred_region
    _
  $region25: #{self_attention_layer_forward.11} parent=0 // pred_fallthru
    _
  // Predicated region
  $region26: #{self_attention_layer_forward.11} parent=0 // pred_check
    _
  $region27: #{self_attention_layer_forward.11} parent=0 // pred_check_branch
    %127 = sbr.rel (0) target = $region29
  $region28: #{self_attention_layer_forward.11} parent=0 // pred_region
    _
  $region29: #{self_attention_layer_forward.11} parent=0 // pred_fallthru
    _

// kernel: self_attention_layer_forward.13
$region0: #{self_attention_layer_forward.13}
  #allocation0 [shape = 'u32[]', space=smem, size = 0x4, offset = 0x4, fixed_abs, tag = 'smem constant byte address 0x4 - core index']
  #allocation1 [shape = 'u32[144,128]{1,0:T(1,128)}', space=vmem, size = 0x12000, scoped, tag = 'internal scratch']
  %s0 = inlined_call_operand.vmem [shape: f32[16,32], index: 0, kind: input, shape index: {}]
  %s1 = inlined_call_operand.vmem [shape: f32[16,32], index: 1, kind: input, shape index: {}]
  %s2 = inlined_call_operand.vmem [shape: f32[1,32], index: 2, kind: input, shape index: {}]
  %s3 = inlined_call_operand.vmem [shape: f32[1,32], index: 3, kind: input, shape index: {}]
  %s4 = inlined_call_operand.hbm [shape: f32[16,32], index: 4, kind: output, shape index: {}]
  %s5 = sld [smem:[#allocation0]]
  $region26: #{self_attention_layer_forward.13} parent=0
    _
  %s7 = ssub.s32 1, %s5
  %s8 = scalar_select 0, %s7, %s5
  $region1: #{self_attention_layer_forward.13} parent=0
    #allocation2 [shape = 'u8[8192]{0}', space=vmem, size = 0x2000, scoped, tag = 'output window, operand 0, single buffered']
    #allocation3 [shape = 's32[1]{0}', space=sflag, size = 0x4, scoped, tag = 'scoped memory for self_attention_layer_forward.13']
    %9 = vsyncpa [#allocation3], 0
    // Predicated region
    $region2: #{self_attention_layer_forward.13} parent=1 // pred_check
      _
    $region3: #{self_attention_layer_forward.13} parent=1 // pred_check_branch
      %11 = sbr.rel (0) target = $region5
    $region4: #{self_attention_layer_forward.13} parent=1 // pred_region
      _
    $region5: #{self_attention_layer_forward.13} parent=1 // pred_fallthru
      _
    // Predicated region
    $region6: #{self_attention_layer_forward.13} parent=1 // pred_check
      _
    $region7: #{self_attention_layer_forward.13} parent=1 // pred_check_branch
      %13 = sbr.rel (0) target = $region9
    $region8: #{self_attention_layer_forward.13} parent=1 // pred_region
      _
    $region9: #{self_attention_layer_forward.13} parent=1 // pred_fallthru
      _
    // Predicated region
    $region10: #{self_attention_layer_forward.13} parent=1 // pred_check
      _
    $region11: #{self_attention_layer_forward.13} parent=1 // pred_check_branch
      %15 = sbr.rel (0) target = $region13
    $region12: #{self_attention_layer_forward.13} parent=1 // pred_region
      _
    $region13: #{self_attention_layer_forward.13} parent=1 // pred_fallthru
      _
    // Predicated region
    $region14: #{self_attention_layer_forward.13} parent=1 // pred_check
      _
    $region15: #{self_attention_layer_forward.13} parent=1 // pred_check_branch
      %17 = sbr.rel (0) target = $region17
    $region16: #{self_attention_layer_forward.13} parent=1 // pred_region
      _
    $region17: #{self_attention_layer_forward.13} parent=1 // pred_fallthru
      _
    %v18 = vld [vmem:[%s0] sm:$0xff]
    %v19 = vld [vmem:[%s0 + $0x8] sm:$0xff]
    %v20 = vld [vmem:[%s1] sm:$0xff]
    %v21 = vld [vmem:[%s1 + $0x8] sm:$0xff]
    %v22 = vadd.f32 %v18, %v20
    %v23 = vadd.f32 %v19, %v21
    %vm24 = vcmask 261120
    %v25 = vsel %vm24, %v22, 0.0
    %26 = vadd.xlane.f32.xlu0 %v25
    %v27 = vpop.xlane.xlu0 %26
    %v28 = vsel %vm24, %v23, 0.0
    %29 = vadd.xlane.f32.xlu0 %v28
    %v30 = vpop.xlane.xlu0 %29
    %v31 = vrcp.pop 32.0
    %v32 = vmul.f32 %v27, %v31
    %v33 = vmul.f32 %v30, %v31
    %v34 = vsub.f32 %v22, %v32
    %v35 = vsub.f32 %v23, %v33
    %v36 = vmul.f32 %v34, %v34
    %v37 = vmul.f32 %v35, %v35
    %v38 = vsel %vm24, %v36, 0.0
    %39 = vadd.xlane.f32.xlu0 %v38
    %v40 = vpop.xlane.xlu0 %39
    %v41 = vsel %vm24, %v37, 0.0
    %42 = vadd.xlane.f32.xlu0 %v41
    %v43 = vpop.xlane.xlu0 %42
    %v44 = vmul.f32 %v40, %v31
    %v45 = vmul.f32 %v43, %v31
    %v46 = vadd.f32 %v44, 1e-05
    %v47 = vadd.f32 %v45, 1e-05
    %v48 = vrsqrt.pop %v46
    %v49 = vrsqrt.pop %v47
    %v50 = vmul.f32 %v34, %v48
    %v51 = vmul.f32 %v35, %v49
    %v52 = vld [vmem:[%s2] sm:$0x1]
    %v54 = vlaneseq
    %v55 = vshrl.u32 %v54, 7
    %v56 = vsub.s32 0, %v55
    %v57 = vrot.slane %v52, %v56
    %v59 = vmul.f32 %v50, %v57
    %v60 = vmul.f32 %v51, %v57
    %v61 = vld [vmem:[%s3] sm:$0x1]
    %v63 = vlaneseq
    %v64 = vshrl.u32 %v63, 7
    %v65 = vsub.s32 0, %v64
    %v66 = vrot.slane %v61, %v65
    %v68 = vadd.f32 %v59, %v66
    %v69 = vadd.f32 %v60, %v66
    %70 = vst.msk [vmem:[#allocation2] sm:$0xff] %vm24, %v68
    %71 = vst.msk [vmem:[#allocation2 + $0x8] sm:$0xff] %vm24, %v69
    // Predicated region
    $region18: #{self_attention_layer_forward.13} parent=1 // pred_check
      _
    $region19: #{self_attention_layer_forward.13} parent=1 // pred_check_branch
      %73 = sbr.rel (0) target = $region21
    $region20: #{self_attention_layer_forward.13} parent=1 // pred_region
      %s75 = ssub.s32 256, 256
      %76 = vsyncadd [#allocation3], %s75
      %s77 = sshll.u32 [#allocation2], 4
      %s78 = int_to_ptr.vmem [resolvable:$true] %s77
      %83 = dma.vmem_to_hbm [thread:$0]  %s78, 256, %s4, [#allocation3], 128, 128, 8
    $region21: #{self_attention_layer_forward.13} parent=1 // pred_fallthru
      _
    // Predicated region
    $region22: #{self_attention_layer_forward.13} parent=1 // pred_check
      _
    $region23: #{self_attention_layer_forward.13} parent=1 // pred_check_branch
      %85 = sbr.rel (0) target = $region25
    $region24: #{self_attention_layer_forward.13} parent=1 // pred_region
      %86 = dma.done [#allocation3], 256
    $region25: #{self_attention_layer_forward.13} parent=1 // pred_fallthru
      _
    %87 = vsyncpa [#allocation3], 1

// kernel: self_attention_layer_forward.12
$region0: #{self_attention_layer_forward.12}
  #allocation0 [shape = 'u32[]', space=smem, size = 0x4, offset = 0x4, fixed_abs, tag = 'smem constant byte address 0x4 - core index']
  #allocation1 [shape = 'u32[144,128]{1,0:T(1,128)}', space=vmem, size = 0x12000, scoped, tag = 'internal scratch']
  #allocation2 [shape = 'f32[16,32]{1,0:T(8,128)}', space=vmem, size = 0x2000, scoped, tag = 'scratch operand']
  %s0 = inlined_call_operand.vmem [shape: bf16[16,64], index: 0, kind: input, shape index: {}]
  %s1 = inlined_call_operand.vmem [shape: bf16[64,32], index: 1, kind: input, shape index: {}]
  %s2 = inlined_call_operand.vmem [shape: f32[1,32], index: 2, kind: input, shape index: {}]
  %s3 = inlined_call_operand.vmem [shape: f32[16,32], index: 3, kind: output, shape index: {}]
  %s4 = sld [smem:[#allocation0]]
  $region30: #{self_attention_layer_forward.12} parent=0
    _
  %s6 = ssub.s32 1, %s4
  %s7 = scalar_select 0, %s6, %s4
  // Predicated region
  $region2: #{self_attention_layer_forward.12} parent=0 // pred_check
    _
  $region3: #{self_attention_layer_forward.12} parent=0 // pred_check_branch
    %9 = sbr.rel (0) target = $region5
  $region4: #{self_attention_layer_forward.12} parent=0 // pred_region
    _
  $region5: #{self_attention_layer_forward.12} parent=0 // pred_fallthru
    _
  // Predicated region
  $region6: #{self_attention_layer_forward.12} parent=0 // pred_check
    _
  $region7: #{self_attention_layer_forward.12} parent=0 // pred_check_branch
    %11 = sbr.rel (0) target = $region9
  $region8: #{self_attention_layer_forward.12} parent=0 // pred_region
    _
  $region9: #{self_attention_layer_forward.12} parent=0 // pred_fallthru
    _
  // Predicated region
  $region10: #{self_attention_layer_forward.12} parent=0 // pred_check
    _
  $region11: #{self_attention_layer_forward.12} parent=0 // pred_check_branch
    %13 = sbr.rel (0) target = $region13
  $region12: #{self_attention_layer_forward.12} parent=0 // pred_region
    _
  $region13: #{self_attention_layer_forward.12} parent=0 // pred_fallthru
    _
  %p15 = scmp.eq.s32.totalorder 0, 0
  // Predicated region
  $region14: #{self_attention_layer_forward.12} parent=0 // pred_check
    %p16 = pneg %p15
  $region15: #{self_attention_layer_forward.12} parent=0 // pred_check_branch
    %18 = sbr.rel (%p16) target = $region17
  $region16: #{self_attention_layer_forward.12} parent=0 // pred_region
    %vm19 = vcmask 261120
    %20 = vst.msk [vmem:[#allocation2] sm:$0xff] %vm19, 0.0
    %21 = vst.msk [vmem:[#allocation2 + $0x8] sm:$0xff] %vm19, 0.0
  $region17: #{self_attention_layer_forward.12} parent=0 // pred_fallthru
    _
  %v22 = vld [vmem:[#allocation2] sm:$0xff]
  %v23 = vld [vmem:[#allocation2 + $0x8] sm:$0xff]
  %v24 = vld [vmem:[%s0] sm:$0xf]
  %v25 = vld [vmem:[%s0 + $0x4] sm:$0xf]
  %v26 = vld [vmem:[%s1] sm:$0xf]
  %v27 = vld [vmem:[%s1 + $0x4] sm:$0xf]
  %v28 = vld [vmem:[%s1 + $0x8] sm:$0xf]
  %v29 = vld [vmem:[%s1 + $0xc] sm:$0xf]
  %v30 = vld [vmem:[%s1 + $0x10] sm:$0xf]
  %v31 = vld [vmem:[%s1 + $0x14] sm:$0xf]
  %v32 = vld [vmem:[%s1 + $0x18] sm:$0xf]
  %v33 = vld [vmem:[%s1 + $0x1c] sm:$0xf]
  %v36 = vunpack.c.l.b16 %v24
  %v37 = vunpack.c.l.b16 %v25
  %v38 = vpack.c.b16 %v37, %v36
  %v47 = vunpack.c.l.b16 %v26
  %v48 = vunpack.c.l.b16 %v27
  %v49 = vunpack.c.l.b16 %v28
  %v50 = vunpack.c.l.b16 %v29
  %v51 = vunpack.c.l.b16 %v30
  %v52 = vunpack.c.l.b16 %v31
  %v53 = vunpack.c.l.b16 %v32
  %v54 = vunpack.c.l.b16 %v33
  %v55 = vpack.c.b16 %v48, %v47
  %v56 = vpack.c.b16 %v50, %v49
  %v57 = vpack.c.b16 %v52, %v51
  %v58 = vpack.c.b16 %v54, %v53
  %vm63 = vcmask 523264
  %v65 = vsel %vm63, %v38, 0
  %67 = vmatprep.subr.bf16.mxu0 0
  %68 = vmatpush1.bf16.msra.mxu0 0
  %69 = vmatprep.subr.bf16.mxu0 0
  %70 = vmatpush1.bf16.msra.mxu0 0
  %71 = vmatprep.subr.bf16.mxu0 0
  %72 = vmatpush1.bf16.msra.mxu0 0
  %73 = vmatprep.subr.bf16.mxu0 0
  %74 = vmatpush1.bf16.msra.mxu0 0
  %75 = vmatprep.subr.bf16.mxu0 0
  %76 = vmatpush1.bf16.msra.mxu0 %v58
  %77 = vmatprep.subr.bf16.mxu0 0
  %78 = vmatpush1.bf16.msra.mxu0 %v57
  %79 = vmatprep.subr.bf16.mxu0 0
  %80 = vmatpush1.bf16.msra.mxu0 %v56
  %81 = vmatprep.subr.bf16.mxu0 0
  %82 = vmatpush1.bf16.msra.mxu0 %v55
  %83 = vmatprep.subr.bf16.mxu0 0
  %84 = vmatpush2.bf16.msra.mxu0 0
  %85 = vmatprep.subr.bf16.mxu0 0
  %86 = vmatpush2.bf16.msra.mxu0 0
  %87 = vmatprep.subr.bf16.mxu0 0
  %88 = vmatpush2.bf16.msra.mxu0 0
  %89 = vmatprep.subr.bf16.mxu0 0
  %90 = vmatpush2.bf16.msra.mxu0 0
  %91 = vmatprep.subr.bf16.mxu0 0
  %92 = vmatpush2.bf16.msra.mxu0 0
  %93 = vmatprep.subr.bf16.mxu0 0
  %94 = vmatpush2.bf16.msra.mxu0 0
  %95 = vmatprep.subr.bf16.mxu0 0
  %96 = vmatpush2.bf16.msra.mxu0 0
  %97 = vmatprep.subr.bf16.mxu0 0
  %98 = vmatpush2.bf16.msra.mxu0 0
  %99 = vmatprep.mubr.bf16.mxu0 0
  %100 = vmatmul.mubr.bf16.gmra.mxu0 %v65
  %v101 = vpop.f32.mrf.mxu0
  %v102 = vadd.f32 0.0, %v101
  %v103 = vpop.f32.mrf.mxu0
  %v104 = vpop.f32.mrf.mxu0
  %v105 = vadd.f32 0.0, %v104
  %v106 = vpop.f32.mrf.mxu0
  %107 = vdwg.mxu0
  %v108 = vadd.f32 %v22, %v102
  %v109 = vadd.f32 %v23, %v105
  %vm110 = vcmask 261120
  %111 = vst.msk [vmem:[#allocation2] sm:$0xff] %vm110, %v108
  %112 = vst.msk [vmem:[#allocation2 + $0x8] sm:$0xff] %vm110, %v109
  // Predicated region
  $region18: #{self_attention_layer_forward.12} parent=0 // pred_check
    %p113 = pneg %p15
  $region19: #{self_attention_layer_forward.12} parent=0 // pred_check_branch
    %115 = sbr.rel (%p113) target = $region21
  $region20: #{self_attention_layer_forward.12} parent=0 // pred_region
    %v116 = vld [vmem:[#allocation2] sm:$0xff]
    %v117 = vld [vmem:[#allocation2 + $0x8] sm:$0xff]
    %v118 = vld [vmem:[%s2] sm:$0x1]
    %v120 = vlaneseq
    %v121 = vshrl.u32 %v120, 7
    %v122 = vsub.s32 0, %v121
    %v123 = vrot.slane %v118, %v122
    %v125 = vadd.f32 %v116, %v123
    %v126 = vadd.f32 %v117, %v123
    %127 = vst.msk [vmem:[%s3] sm:$0xff] %vm110, %v125
    %128 = vst.msk [vmem:[%s3 + $0x8] sm:$0xff] %vm110, %v126
  $region21: #{self_attention_layer_forward.12} parent=0 // pred_fallthru
    _
  // Predicated region
  $region22: #{self_attention_layer_forward.12} parent=0 // pred_check
    _
  $region23: #{self_attention_layer_forward.12} parent=0 // pred_check_branch
    %130 = sbr.rel (0) target = $region25
  $region24: #{self_attention_layer_forward.12} parent=0 // pred_region
    _
  $region25: #{self_attention_layer_forward.12} parent=0 // pred_fallthru
    _
  // Predicated region
  $region26: #{self_attention_layer_forward.12} parent=0 // pred_check
    _
  $region27: #{self_attention_layer_forward.12} parent=0 // pred_check_branch
    %132 = sbr.rel (0) target = $region29
  $region28: #{self_attention_layer_forward.12} parent=0 // pred_region
    _
  $region29: #{self_attention_layer_forward.12} parent=0 // pred_fallthru
    _

</llo_original>
